<compile_context>
chip_gen: v5e
topology: v5e:2x2
jax: 0.10.0
libtpu: 0.0.40
codegen_flags: <defaults>
</compile_context>

<pallas_src>
import jax
import jax.numpy as jnp
import numpy as np
from jax.experimental import pallas as pl
from jax.experimental.pallas import tpu as pltpu

# ---- static geometry implied by the module -------------------------------------------
K1, S1, P1 = 11, 4, 1                   # Conv1d(1, 16, 11, stride=4, padding=1)
K2, S2, P2 = 5, 2, 2                    # Conv1d(16, 16, 5, stride=2, padding=2)
C1, C2 = 16, 16
L_IN = 1024                             # flattened per-sample signal length
L1 = (L_IN + 2 * P1 - K1) // S1 + 1     # 254
LP1 = L1 // 2                           # 127  after MaxPool1d(2)
L2 = (LP1 + 2 * P2 - K2) // S2 + 1      # 64
LP2 = L2 // 2                           # 32   after MaxPool1d(2)
FEAT = C2 * LP2                         # 512
HID = 64
PAD_ROWS = 136                          # >= LP1 + 2*P2 = 131, rounded up to multiple of 8
BT = 1                                  # samples per grid step (must divide batch size)


# ---- fused Pallas kernel ---------------------------------------------------------------
def fused_kernel(a_ref, w1_ref, b1_ref, w2_ref, b2_ref,
                 wf1_ref, bf1_ref, wf2_ref, bf2_ref, o_ref, padbuf):
    """One grid step = BT samples: conv1+ReLU+pool, conv2+ReLU+pool, fc1+ReLU, fc2+sigmoid.

    a_ref  : (BT, L1, K1)   im2col patches of the zero-padded input signal
    w1_ref : (K1, C1)       conv1 weight (transposed)
    w2_ref : (K2, C1, C2)   w2_ref[k] == W2[:, :, k].T
    wf1_ref: (LP2, C1=C2, HID)  fc1 weight re-laid so wf1_ref[l][c, j] = Wfc1[j, c*LP2 + l]
    wf2_ref: (1, HID)       fc2 weight row
    o_ref  : (BT, 1, 1)     sigmoid output
    padbuf : (PAD_ROWS, C1) VMEM scratch: zero-padded conv2 input (pad rows 0..1, 129..130)
    """
    # Zero ONLY the pad row-tiles (rows [0,8) and [128,136)); the data store below
    # overwrites rows [2,129), leaving rows 0,1 and 129,130 as the conv2 zero padding.
    zrow = jnp.zeros((8, C1), jnp.float32)
    padbuf[pl.ds(0, 8), :] = zrow
    padbuf[pl.ds(PAD_ROWS - 8, 8), :] = zrow

    w1 = w1_ref[...]            # (11, 16)
    b1 = b1_ref[...]            # (1, 16)
    b2 = b2_ref[...]            # (1, 16)
    bf1 = bf1_ref[...]          # (1, 64)
    wf2 = wf2_ref[...]          # (1, 64)
    bf2 = bf2_ref[...]          # (1, 1)

    for s in range(BT):                                   # unrolled per-sample loop
        a_s = a_ref.at[s]                                 # (L1, K1) ref view

        # ---- conv1 + ReLU fused with MaxPool1d(2): even/odd output rows as two matmuls
        a_even = a_s[pl.ds(0, LP1, 2), :]                 # (127, 11)
        a_odd = a_s[pl.ds(1, LP1, 2), :]                  # (127, 11)
        h_e = jnp.maximum(jnp.dot(a_even, w1, preferred_element_type=jnp.float32) + b1, 0.0)
        h_o = jnp.maximum(jnp.dot(a_odd, w1, preferred_element_type=jnp.float32) + b1, 0.0)
        p1 = jnp.maximum(h_e, h_o)                        # (127, 16)

        # zero-padded conv2 input (pad rows already cleared above)
        padbuf[pl.ds(P2, LP1), :] = p1                    # rows 2..128

        # ---- conv2 + ReLU fused with MaxPool1d(2): 5 tap-matmuls for even/odd positions
        acc_e = jnp.zeros((LP2, C2), jnp.float32)
        acc_o = jnp.zeros((LP2, C2), jnp.float32)
        for k in range(K2):
            w2k = w2_ref[k]                               # (16, 16)
            acc_e = acc_e + jnp.dot(padbuf[pl.ds(k, LP2, 4), :], w2k,
                                    preferred_element_type=jnp.float32)
            acc_o = acc_o + jnp.dot(padbuf[pl.ds(k + 2, LP2, 4), :], w2k,
                                    preferred_element_type=jnp.float32)
        h2e = jnp.maximum(acc_e + b2, 0.0)
        h2o = jnp.maximum(acc_o + b2, 0.0)
        p2 = jnp.maximum(h2e, h2o)                        # (32, 16), (length, channel)

        # ---- fc1 fused: h[j] = sum_{l,c} p2[l,c] * wf1r[l,c,j]  (PyTorch flatten(1) order
        # is absorbed into wf1r), done as LP2 small matmuls to avoid any in-kernel
        # transpose / sublane->lane reshape of p2.
        h = jnp.zeros((1, HID), jnp.float32)
        for l in range(LP2):
            h = h + jnp.dot(p2[l:l + 1, :], wf1_ref[l],
                            preferred_element_type=jnp.float32)
        h = jnp.maximum(h + bf1, 0.0)                     # (1, 64)

        # ---- fc2 + sigmoid: VPU multiply + cross-lane reduce (no N=1 MXU matmul)
        logit = jnp.sum(h * wf2, axis=-1, keepdims=True) + bf2     # (1, 1)
        o_ref[s] = 1.0 / (1.0 + jnp.exp(-logit))


# ---- wrapper ----------------------------------------------------------------------------
def forward(x, params):
    w1, b1, w2, b2, wf1, bf1, wf2, bf2 = params
    B = x.shape[0]
    assert B % BT == 0, "BT must divide the batch size"

    xs = x.reshape(B, -1).astype(jnp.float32)            # == x.reshape(B, 1, -1) squeezed
    # glue: im2col gather for conv1 (the matmuls themselves happen inside the kernel)
    xp = jnp.pad(xs, ((0, 0), (P1, P1)))                 # (B, 1026)
    idx = S1 * jnp.arange(L1)[:, None] + jnp.arange(K1)[None, :]
    A1 = xp[:, idx]                                      # (B, 254, 11)

    w1r = jnp.transpose(w1[:, 0, :])                     # (11, 16)
    w2t = jnp.transpose(w2, (2, 1, 0))                   # (5, 16, 16), w2t[k] = W2[:, :, k].T
    # fc1 weight re-laid so the kernel consumes p2 in (length, channel) layout directly:
    # wf1r[l, c, j] = wf1[j, c*LP2 + l]   (PyTorch flatten(1) is channel-major)
    wf1r = jnp.transpose(wf1.reshape(HID, C2, LP2), (2, 1, 0))     # (32, 16, 64)

    out = pl.pallas_call(
        fused_kernel,
        out_shape=jax.ShapeDtypeStruct((B, 1, 1), jnp.float32),
        grid_spec=pltpu.PrefetchScalarGridSpec(
            num_scalar_prefetch=0,
            grid=(B // BT,),
            in_specs=[
                pl.BlockSpec((BT, L1, K1), lambda i: (i, 0, 0)),       # im2col patches
                pl.BlockSpec((K1, C1), lambda i: (0, 0)),              # conv1 weight
                pl.BlockSpec((1, C1), lambda i: (0, 0)),               # conv1 bias
                pl.BlockSpec((K2, C1, C2), lambda i: (0, 0, 0)),       # conv2 weight
                pl.BlockSpec((1, C2), lambda i: (0, 0)),               # conv2 bias
                pl.BlockSpec((LP2, C2, HID), lambda i: (0, 0, 0)),     # fc1 weight (re-laid)
                pl.BlockSpec((1, HID), lambda i: (0, 0)),              # fc1 bias
                pl.BlockSpec((1, HID), lambda i: (0, 0)),              # fc2 weight row
                pl.BlockSpec((1, 1), lambda i: (0, 0)),                # fc2 bias
            ],
            out_specs=pl.BlockSpec((BT, 1, 1), lambda i: (i, 0, 0)),
            scratch_shapes=[pltpu.VMEM((PAD_ROWS, C1), jnp.float32)],
        ),
        compiler_params=pltpu.CompilerParams(dimension_semantics=("parallel",)),
    )(A1, w1r, b1.reshape(1, C1), w2t, b2.reshape(1, C2),
      wf1r, bf1.reshape(1, HID), wf2.reshape(1, HID), bf2.reshape(1, 1))

    return out.reshape(B, 1)


# ---- pure-JAX reference (exact-f32 matmuls) ---------------------------------------------
def reference(x, params):
    w1, b1, w2, b2, wf1, bf1, wf2, bf2 = params
    hp = jax.lax.Precision.HIGHEST
    B = x.shape[0]
    xs = x.reshape(B, -1)
    xp = jnp.pad(xs, ((0, 0), (P1, P1)))
    idx = S1 * jnp.arange(L1)[:, None] + jnp.arange(K1)[None, :]
    patches = xp[:, idx]                                            # (B, L1, K1)
    h1 = jnp.einsum('btk,ok->bot', patches, w1[:, 0, :], precision=hp) + b1[None, :, None]
    h1 = jnp.maximum(h1, 0.0)
    p1 = jnp.max(h1.reshape(B, C1, LP1, 2), axis=-1)                # (B, 16, 127)
    p1p = jnp.pad(p1, ((0, 0), (0, 0), (P2, P2)))
    idx2 = S2 * jnp.arange(L2)[:, None] + jnp.arange(K2)[None, :]
    patches2 = p1p[:, :, idx2]                                      # (B, 16, L2, K2)
    h2 = jnp.einsum('bctk,ock->bot', patches2, w2, precision=hp) + b2[None, :, None]
    h2 = jnp.maximum(h2, 0.0)
    p2 = jnp.max(h2.reshape(B, C2, LP2, 2), axis=-1)                # (B, 16, 32)
    feat = p2.reshape(B, FEAT)
    fh = jnp.maximum(jnp.dot(feat, wf1.T, precision=hp) + bf1, 0.0)
    logits = jnp.dot(fh, wf2.T, precision=hp) + bf2
    return jax.nn.sigmoid(logits)


# ---- main -------------------------------------------------------------------------------
if __name__ == "__main__":
    def uniform(k, shape, fan_in):
        bound = 1.0 / np.sqrt(fan_in)
        return jax.random.uniform(k, shape, jnp.float32, -bound, bound)

    key = jax.random.PRNGKey(0)
    ks = jax.random.split(key, 9)
    params = (
        uniform(ks[0], (C1, 1, K1), 1 * K1),       # conv1 weight
        uniform(ks[1], (C1,), 1 * K1),             # conv1 bias
        uniform(ks[2], (C2, C1, K2), C1 * K2),     # conv2 weight
        uniform(ks[3], (C2,), C1 * K2),            # conv2 bias
        uniform(ks[4], (HID, FEAT), FEAT),         # fc1 weight
        uniform(ks[5], (HID,), FEAT),              # fc1 bias
        uniform(ks[6], (1, HID), HID),             # fc2 weight
        uniform(ks[7], (1,), HID),                 # fc2 bias
    )

    B = 2
    x = jax.random.normal(ks[8], (B, L_IN), jnp.float32)

    out = jax.jit(forward)(x, params)
    out = jax.block_until_ready(out)
    assert out.shape == (B, 1), out.shape

    ref = reference(x, params)
    # Tolerance tightened 4x vs. the previous version; it is bounded by possible MXU
    # bf16-pass rounding of f32 matmuls (precision model), not by kernel structure --
    # any indexing/ordering bug would produce O(0.1) errors and fail this check.
    np.testing.assert_allclose(np.asarray(out), np.asarray(ref), rtol=0.0, atol=5e-3)

    print("KERNEL_OK")
</pallas_src>

<mosaic_0001>
module attributes {stable_mosaic.version = 11 : i64} {
  func.func @fused_kernel(%arg0: i32, %arg1: memref<1x254x11xf32, #tpu.memory_space<vmem>>, %arg2: memref<11x16xf32, #tpu.memory_space<vmem>>, %arg3: memref<1x16xf32, #tpu.memory_space<vmem>>, %arg4: memref<5x16x16xf32, #tpu.memory_space<vmem>>, %arg5: memref<1x16xf32, #tpu.memory_space<vmem>>, %arg6: memref<32x16x64xf32, #tpu.memory_space<vmem>>, %arg7: memref<1x64xf32, #tpu.memory_space<vmem>>, %arg8: memref<1x64xf32, #tpu.memory_space<vmem>>, %arg9: memref<1x1xf32, #tpu.memory_space<vmem>>, %arg10: memref<1x1x1xf32, #tpu.memory_space<vmem>>, %arg11: memref<136x16xf32, #tpu.memory_space<vmem>>) attributes {dimension_semantics = [#tpu.dimension_semantics<parallel>], iteration_bounds = array<i64: 2>, scalar_prefetch = 0 : i64, scratch_operands = 1 : i64, tpu.core_type = #tpu.core_type<tc>, window_params = [{transform_indices = @transform_0, window_bounds = array<i64: 1, 254, 11>}, {pipeline_mode = #tpu.pipeline_mode<synchronous>, transform_indices = @transform_1, window_bounds = array<i64: 11, 16>}, {pipeline_mode = #tpu.pipeline_mode<synchronous>, transform_indices = @transform_2, window_bounds = array<i64: 1, 16>}, {pipeline_mode = #tpu.pipeline_mode<synchronous>, transform_indices = @transform_3, window_bounds = array<i64: 5, 16, 16>}, {pipeline_mode = #tpu.pipeline_mode<synchronous>, transform_indices = @transform_4, window_bounds = array<i64: 1, 16>}, {pipeline_mode = #tpu.pipeline_mode<synchronous>, transform_indices = @transform_5, window_bounds = array<i64: 32, 16, 64>}, {pipeline_mode = #tpu.pipeline_mode<synchronous>, transform_indices = @transform_6, window_bounds = array<i64: 1, 64>}, {pipeline_mode = #tpu.pipeline_mode<synchronous>, transform_indices = @transform_7, window_bounds = array<i64: 1, 64>}, {pipeline_mode = #tpu.pipeline_mode<synchronous>, transform_indices = @transform_8, window_bounds = array<i64: 1, 1>}, {transform_indices = @transform_9, window_bounds = array<i64: 1, 1, 1>}]} {
    %cst = arith.constant 0.000000e+00 : f32
    %0 = vector.broadcast %cst : f32 to vector<8x16xf32>
    %c0 = arith.constant 0 : index
    %c0_0 = arith.constant 0 : index
    %1 = vector.load %arg11[%c0, %c0_0] : memref<136x16xf32, #tpu.memory_space<vmem>>, vector<8x16xf32>
    tpu.vector_store %arg11[%c0, %c0_0], %0 {strides = array<i32>} : memref<136x16xf32, #tpu.memory_space<vmem>>, vector<8x16xf32>,
    %c128 = arith.constant 128 : index
    %c0_1 = arith.constant 0 : index
    %2 = vector.load %arg11[%c128, %c0_1] : memref<136x16xf32, #tpu.memory_space<vmem>>, vector<8x16xf32>
    tpu.vector_store %arg11[%c128, %c0_1], %0 {strides = array<i32>} : memref<136x16xf32, #tpu.memory_space<vmem>>, vector<8x16xf32>,
    %c0_2 = arith.constant 0 : index
    %c0_3 = arith.constant 0 : index
    %3 = vector.load %arg2[%c0_2, %c0_3] : memref<11x16xf32, #tpu.memory_space<vmem>>, vector<11x16xf32>
    %c0_4 = arith.constant 0 : index
    %c0_5 = arith.constant 0 : index
    %4 = vector.load %arg3[%c0_4, %c0_5] : memref<1x16xf32, #tpu.memory_space<vmem>>, vector<1x16xf32>
    %c0_6 = arith.constant 0 : index
    %c0_7 = arith.constant 0 : index
    %5 = vector.load %arg5[%c0_6, %c0_7] : memref<1x16xf32, #tpu.memory_space<vmem>>, vector<1x16xf32>
    %c0_8 = arith.constant 0 : index
    %c0_9 = arith.constant 0 : index
    %6 = vector.load %arg7[%c0_8, %c0_9] : memref<1x64xf32, #tpu.memory_space<vmem>>, vector<1x64xf32>
    %c0_10 = arith.constant 0 : index
    %c0_11 = arith.constant 0 : index
    %7 = vector.load %arg8[%c0_10, %c0_11] : memref<1x64xf32, #tpu.memory_space<vmem>>, vector<1x64xf32>
    %c0_12 = arith.constant 0 : index
    %c0_13 = arith.constant 0 : index
    %8 = vector.load %arg9[%c0_12, %c0_13] : memref<1x1xf32, #tpu.memory_space<vmem>>, vector<1x1xf32>
    %c0_i32 = arith.constant 0 : i32
    %c0_i32_14 = arith.constant 0 : i32
    %c0_i32_15 = arith.constant 0 : i32
    %9 = tpu.memref_slice %arg1[%c0_i32, %c0_i32_14, %c0_i32_15] : memref<1x254x11xf32, #tpu.memory_space<vmem>> -> memref<1x254x11xf32, #tpu.memory_space<vmem>>
    %10 = tpu.memref_squeeze %9 : memref<1x254x11xf32, #tpu.memory_space<vmem>> -> memref<254x11xf32, #tpu.memory_space<vmem>>
    %c0_16 = arith.constant 0 : index
    %c0_17 = arith.constant 0 : index
    %11 = tpu.strided_load %10[%c0_16, %c0_17] {strides = array<i32: 2, 1>} : memref<254x11xf32, #tpu.memory_space<vmem>>, vector<127x11xf32>
    %c0_i32_18 = arith.constant 0 : i32
    %c0_i32_19 = arith.constant 0 : i32
    %c0_i32_20 = arith.constant 0 : i32
    %12 = tpu.memref_slice %arg1[%c0_i32_18, %c0_i32_19, %c0_i32_20] : memref<1x254x11xf32, #tpu.memory_space<vmem>> -> memref<1x254x11xf32, #tpu.memory_space<vmem>>
    %13 = tpu.memref_squeeze %12 : memref<1x254x11xf32, #tpu.memory_space<vmem>> -> memref<254x11xf32, #tpu.memory_space<vmem>>
    %c1 = arith.constant 1 : index
    %c0_21 = arith.constant 0 : index
    %14 = tpu.strided_load %13[%c1, %c0_21] {strides = array<i32: 2, 1>} : memref<254x11xf32, #tpu.memory_space<vmem>>, vector<127x11xf32>
    %cst_22 = arith.constant dense<0.000000e+00> : vector<127x16xf32>
    %15 = tpu.matmul %11, %3, %cst_22 {dimension_numbers = #tpu.dot_dimension_numbers<[1], [0], [0], [1], [0, 0, 1, 1], [], []>} : vector<127x11xf32>, vector<11x16xf32>, vector<127x16xf32> -> vector<127x16xf32>
    %16 = vector.broadcast %4 : vector<1x16xf32> to vector<127x16xf32>
    %17 = arith.addf %15, %16 : vector<127x16xf32>
    %cst_23 = arith.constant 0.000000e+00 : f32
    %18 = vector.broadcast %cst_23 : f32 to vector<127x16xf32>
    %19 = arith.maximumf %17, %18 : vector<127x16xf32>
    %cst_24 = arith.constant dense<0.000000e+00> : vector<127x16xf32>
    %20 = tpu.matmul %14, %3, %cst_24 {dimension_numbers = #tpu.dot_dimension_numbers<[1], [0], [0], [1], [0, 0, 1, 1], [], []>} : vector<127x11xf32>, vector<11x16xf32>, vector<127x16xf32> -> vector<127x16xf32>
    %21 = vector.broadcast %4 : vector<1x16xf32> to vector<127x16xf32>
    %22 = arith.addf %20, %21 : vector<127x16xf32>
    %cst_25 = arith.constant 0.000000e+00 : f32
    %23 = vector.broadcast %cst_25 : f32 to vector<127x16xf32>
    %24 = arith.maximumf %22, %23 : vector<127x16xf32>
    %25 = arith.maximumf %19, %24 : vector<127x16xf32>
    %c2 = arith.constant 2 : index
    %c0_26 = arith.constant 0 : index
    %26 = vector.load %arg11[%c2, %c0_26] : memref<136x16xf32, #tpu.memory_space<vmem>>, vector<127x16xf32>
    tpu.vector_store %arg11[%c2, %c0_26], %25 {strides = array<i32>} : memref<136x16xf32, #tpu.memory_space<vmem>>, vector<127x16xf32>,
    %cst_27 = arith.constant 0.000000e+00 : f32
    %27 = vector.broadcast %cst_27 : f32 to vector<32x16xf32>
    %cst_28 = arith.constant 0.000000e+00 : f32
    %28 = vector.broadcast %cst_28 : f32 to vector<32x16xf32>
    %c0_29 = arith.constant 0 : index
    %c0_30 = arith.constant 0 : index
    %c0_31 = arith.constant 0 : index
    %29 = vector.load %arg4[%c0_29, %c0_30, %c0_31] : memref<5x16x16xf32, #tpu.memory_space<vmem>>, vector<1x16x16xf32>
    %30 = vector.shape_cast %29 : vector<1x16x16xf32> to vector<16x16xf32>
    %c0_32 = arith.constant 0 : index
    %c0_33 = arith.constant 0 : index
    %31 = tpu.strided_load %arg11[%c0_32, %c0_33] {strides = array<i32: 4, 1>} : memref<136x16xf32, #tpu.memory_space<vmem>>, vector<32x16xf32>
    %cst_34 = arith.constant dense<0.000000e+00> : vector<32x16xf32>
    %32 = tpu.matmul %31, %30, %cst_34 {dimension_numbers = #tpu.dot_dimension_numbers<[1], [0], [0], [1], [0, 0, 1, 1], [], []>} : vector<32x16xf32>, vector<16x16xf32>, vector<32x16xf32> -> vector<32x16xf32>
    %33 = arith.addf %27, %32 : vector<32x16xf32>
    %c2_35 = arith.constant 2 : index
    %c0_36 = arith.constant 0 : index
    %34 = tpu.strided_load %arg11[%c2_35, %c0_36] {strides = array<i32: 4, 1>} : memref<136x16xf32, #tpu.memory_space<vmem>>, vector<32x16xf32>
    %cst_37 = arith.constant dense<0.000000e+00> : vector<32x16xf32>
    %35 = tpu.matmul %34, %30, %cst_37 {dimension_numbers = #tpu.dot_dimension_numbers<[1], [0], [0], [1], [0, 0, 1, 1], [], []>} : vector<32x16xf32>, vector<16x16xf32>, vector<32x16xf32> -> vector<32x16xf32>
    %36 = arith.addf %28, %35 : vector<32x16xf32>
    %c1_38 = arith.constant 1 : index
    %c0_39 = arith.constant 0 : index
    %c0_40 = arith.constant 0 : index
    %37 = vector.load %arg4[%c1_38, %c0_39, %c0_40] : memref<5x16x16xf32, #tpu.memory_space<vmem>>, vector<1x16x16xf32>
    %38 = vector.shape_cast %37 : vector<1x16x16xf32> to vector<16x16xf32>
    %c1_41 = arith.constant 1 : index
    %c0_42 = arith.constant 0 : index
    %39 = tpu.strided_load %arg11[%c1_41, %c0_42] {strides = array<i32: 4, 1>} : memref<136x16xf32, #tpu.memory_space<vmem>>, vector<32x16xf32>
    %cst_43 = arith.constant dense<0.000000e+00> : vector<32x16xf32>
    %40 = tpu.matmul %39, %38, %cst_43 {dimension_numbers = #tpu.dot_dimension_numbers<[1], [0], [0], [1], [0, 0, 1, 1], [], []>} : vector<32x16xf32>, vector<16x16xf32>, vector<32x16xf32> -> vector<32x16xf32>
    %41 = arith.addf %33, %40 : vector<32x16xf32>
    %c3 = arith.constant 3 : index
    %c0_44 = arith.constant 0 : index
    %42 = tpu.strided_load %arg11[%c3, %c0_44] {strides = array<i32: 4, 1>} : memref<136x16xf32, #tpu.memory_space<vmem>>, vector<32x16xf32>
    %cst_45 = arith.constant dense<0.000000e+00> : vector<32x16xf32>
    %43 = tpu.matmul %42, %38, %cst_45 {dimension_numbers = #tpu.dot_dimension_numbers<[1], [0], [0], [1], [0, 0, 1, 1], [], []>} : vector<32x16xf32>, vector<16x16xf32>, vector<32x16xf32> -> vector<32x16xf32>
    %44 = arith.addf %36, %43 : vector<32x16xf32>
    %c2_46 = arith.constant 2 : index
    %c0_47 = arith.constant 0 : index
    %c0_48 = arith.constant 0 : index
    %45 = vector.load %arg4[%c2_46, %c0_47, %c0_48] : memref<5x16x16xf32, #tpu.memory_space<vmem>>, vector<1x16x16xf32>
    %46 = vector.shape_cast %45 : vector<1x16x16xf32> to vector<16x16xf32>
    %c2_49 = arith.constant 2 : index
    %c0_50 = arith.constant 0 : index
    %47 = tpu.strided_load %arg11[%c2_49, %c0_50] {strides = array<i32: 4, 1>} : memref<136x16xf32, #tpu.memory_space<vmem>>, vector<32x16xf32>
    %cst_51 = arith.constant dense<0.000000e+00> : vector<32x16xf32>
    %48 = tpu.matmul %47, %46, %cst_51 {dimension_numbers = #tpu.dot_dimension_numbers<[1], [0], [0], [1], [0, 0, 1, 1], [], []>} : vector<32x16xf32>, vector<16x16xf32>, vector<32x16xf32> -> vector<32x16xf32>
    %49 = arith.addf %41, %48 : vector<32x16xf32>
    %c4 = arith.constant 4 : index
    %c0_52 = arith.constant 0 : index
    %50 = tpu.strided_load %arg11[%c4, %c0_52] {strides = array<i32: 4, 1>} : memref<136x16xf32, #tpu.memory_space<vmem>>, vector<32x16xf32>
    %cst_53 = arith.constant dense<0.000000e+00> : vector<32x16xf32>
    %51 = tpu.matmul %50, %46, %cst_53 {dimension_numbers = #tpu.dot_dimension_numbers<[1], [0], [0], [1], [0, 0, 1, 1], [], []>} : vector<32x16xf32>, vector<16x16xf32>, vector<32x16xf32> -> vector<32x16xf32>
    %52 = arith.addf %44, %51 : vector<32x16xf32>
    %c3_54 = arith.constant 3 : index
    %c0_55 = arith.constant 0 : index
    %c0_56 = arith.constant 0 : index
    %53 = vector.load %arg4[%c3_54, %c0_55, %c0_56] : memref<5x16x16xf32, #tpu.memory_space<vmem>>, vector<1x16x16xf32>
    %54 = vector.shape_cast %53 : vector<1x16x16xf32> to vector<16x16xf32>
    %c3_57 = arith.constant 3 : index
    %c0_58 = arith.constant 0 : index
    %55 = tpu.strided_load %arg11[%c3_57, %c0_58] {strides = array<i32: 4, 1>} : memref<136x16xf32, #tpu.memory_space<vmem>>, vector<32x16xf32>
    %cst_59 = arith.constant dense<0.000000e+00> : vector<32x16xf32>
    %56 = tpu.matmul %55, %54, %cst_59 {dimension_numbers = #tpu.dot_dimension_numbers<[1], [0], [0], [1], [0, 0, 1, 1], [], []>} : vector<32x16xf32>, vector<16x16xf32>, vector<32x16xf32> -> vector<32x16xf32>
    %57 = arith.addf %49, %56 : vector<32x16xf32>
    %c5 = arith.constant 5 : index
    %c0_60 = arith.constant 0 : index
    %58 = tpu.strided_load %arg11[%c5, %c0_60] {strides = array<i32: 4, 1>} : memref<136x16xf32, #tpu.memory_space<vmem>>, vector<32x16xf32>
    %cst_61 = arith.constant dense<0.000000e+00> : vector<32x16xf32>
    %59 = tpu.matmul %58, %54, %cst_61 {dimension_numbers = #tpu.dot_dimension_numbers<[1], [0], [0], [1], [0, 0, 1, 1], [], []>} : vector<32x16xf32>, vector<16x16xf32>, vector<32x16xf32> -> vector<32x16xf32>
    %60 = arith.addf %52, %59 : vector<32x16xf32>
    %c4_62 = arith.constant 4 : index
    %c0_63 = arith.constant 0 : index
    %c0_64 = arith.constant 0 : index
    %61 = vector.load %arg4[%c4_62, %c0_63, %c0_64] : memref<5x16x16xf32, #tpu.memory_space<vmem>>, vector<1x16x16xf32>
    %62 = vector.shape_cast %61 : vector<1x16x16xf32> to vector<16x16xf32>
    %c4_65 = arith.constant 4 : index
    %c0_66 = arith.constant 0 : index
    %63 = tpu.strided_load %arg11[%c4_65, %c0_66] {strides = array<i32: 4, 1>} : memref<136x16xf32, #tpu.memory_space<vmem>>, vector<32x16xf32>
    %cst_67 = arith.constant dense<0.000000e+00> : vector<32x16xf32>
    %64 = tpu.matmul %63, %62, %cst_67 {dimension_numbers = #tpu.dot_dimension_numbers<[1], [0], [0], [1], [0, 0, 1, 1], [], []>} : vector<32x16xf32>, vector<16x16xf32>, vector<32x16xf32> -> vector<32x16xf32>
    %65 = arith.addf %57, %64 : vector<32x16xf32>
    %c6 = arith.constant 6 : index
    %c0_68 = arith.constant 0 : index
    %66 = tpu.strided_load %arg11[%c6, %c0_68] {strides = array<i32: 4, 1>} : memref<136x16xf32, #tpu.memory_space<vmem>>, vector<32x16xf32>
    %cst_69 = arith.constant dense<0.000000e+00> : vector<32x16xf32>
    %67 = tpu.matmul %66, %62, %cst_69 {dimension_numbers = #tpu.dot_dimension_numbers<[1], [0], [0], [1], [0, 0, 1, 1], [], []>} : vector<32x16xf32>, vector<16x16xf32>, vector<32x16xf32> -> vector<32x16xf32>
    %68 = arith.addf %60, %67 : vector<32x16xf32>
    %69 = vector.broadcast %5 : vector<1x16xf32> to vector<32x16xf32>
    %70 = arith.addf %65, %69 : vector<32x16xf32>
    %cst_70 = arith.constant 0.000000e+00 : f32
    %71 = vector.broadcast %cst_70 : f32 to vector<32x16xf32>
    %72 = arith.maximumf %70, %71 : vector<32x16xf32>
    %73 = vector.broadcast %5 : vector<1x16xf32> to vector<32x16xf32>
    %74 = arith.addf %68, %73 : vector<32x16xf32>
    %cst_71 = arith.constant 0.000000e+00 : f32
    %75 = vector.broadcast %cst_71 : f32 to vector<32x16xf32>
    %76 = arith.maximumf %74, %75 : vector<32x16xf32>
    %77 = arith.maximumf %72, %76 : vector<32x16xf32>
    %cst_72 = arith.constant 0.000000e+00 : f32
    %78 = vector.broadcast %cst_72 : f32 to vector<1x64xf32>
    %79 = vector.extract_strided_slice %77 {offsets = [0, 0], sizes = [1, 16], strides = [1, 1]} : vector<32x16xf32> to vector<1x16xf32>
    %c0_73 = arith.constant 0 : index
    %c0_74 = arith.constant 0 : index
    %c0_75 = arith.constant 0 : index
    %80 = vector.load %arg6[%c0_73, %c0_74, %c0_75] : memref<32x16x64xf32, #tpu.memory_space<vmem>>, vector<1x16x64xf32>
    %81 = vector.shape_cast %80 : vector<1x16x64xf32> to vector<16x64xf32>
    %cst_76 = arith.constant dense<0.000000e+00> : vector<1x64xf32>
    %82 = tpu.matmul %79, %81, %cst_76 {dimension_numbers = #tpu.dot_dimension_numbers<[1], [0], [0], [1], [0, 0, 1, 1], [], []>} : vector<1x16xf32>, vector<16x64xf32>, vector<1x64xf32> -> vector<1x64xf32>
    %83 = arith.addf %78, %82 : vector<1x64xf32>
    %84 = vector.extract_strided_slice %77 {offsets = [1, 0], sizes = [1, 16], strides = [1, 1]} : vector<32x16xf32> to vector<1x16xf32>
    %c1_77 = arith.constant 1 : index
    %c0_78 = arith.constant 0 : index
    %c0_79 = arith.constant 0 : index
    %85 = vector.load %arg6[%c1_77, %c0_78, %c0_79] : memref<32x16x64xf32, #tpu.memory_space<vmem>>, vector<1x16x64xf32>
    %86 = vector.shape_cast %85 : vector<1x16x64xf32> to vector<16x64xf32>
    %cst_80 = arith.constant dense<0.000000e+00> : vector<1x64xf32>
    %87 = tpu.matmul %84, %86, %cst_80 {dimension_numbers = #tpu.dot_dimension_numbers<[1], [0], [0], [1], [0, 0, 1, 1], [], []>} : vector<1x16xf32>, vector<16x64xf32>, vector<1x64xf32> -> vector<1x64xf32>
    %88 = arith.addf %83, %87 : vector<1x64xf32>
    %89 = vector.extract_strided_slice %77 {offsets = [2, 0], sizes = [1, 16], strides = [1, 1]} : vector<32x16xf32> to vector<1x16xf32>
    %c2_81 = arith.constant 2 : index
    %c0_82 = arith.constant 0 : index
    %c0_83 = arith.constant 0 : index
    %90 = vector.load %arg6[%c2_81, %c0_82, %c0_83] : memref<32x16x64xf32, #tpu.memory_space<vmem>>, vector<1x16x64xf32>
    %91 = vector.shape_cast %90 : vector<1x16x64xf32> to vector<16x64xf32>
    %cst_84 = arith.constant dense<0.000000e+00> : vector<1x64xf32>
    %92 = tpu.matmul %89, %91, %cst_84 {dimension_numbers = #tpu.dot_dimension_numbers<[1], [0], [0], [1], [0, 0, 1, 1], [], []>} : vector<1x16xf32>, vector<16x64xf32>, vector<1x64xf32> -> vector<1x64xf32>
    %93 = arith.addf %88, %92 : vector<1x64xf32>
    %94 = vector.extract_strided_slice %77 {offsets = [3, 0], sizes = [1, 16], strides = [1, 1]} : vector<32x16xf32> to vector<1x16xf32>
    %c3_85 = arith.constant 3 : index
    %c0_86 = arith.constant 0 : index
    %c0_87 = arith.constant 0 : index
    %95 = vector.load %arg6[%c3_85, %c0_86, %c0_87] : memref<32x16x64xf32, #tpu.memory_space<vmem>>, vector<1x16x64xf32>
    %96 = vector.shape_cast %95 : vector<1x16x64xf32> to vector<16x64xf32>
    %cst_88 = arith.constant dense<0.000000e+00> : vector<1x64xf32>
    %97 = tpu.matmul %94, %96, %cst_88 {dimension_numbers = #tpu.dot_dimension_numbers<[1], [0], [0], [1], [0, 0, 1, 1], [], []>} : vector<1x16xf32>, vector<16x64xf32>, vector<1x64xf32> -> vector<1x64xf32>
    %98 = arith.addf %93, %97 : vector<1x64xf32>
    %99 = vector.extract_strided_slice %77 {offsets = [4, 0], sizes = [1, 16], strides = [1, 1]} : vector<32x16xf32> to vector<1x16xf32>
    %c4_89 = arith.constant 4 : index
    %c0_90 = arith.constant 0 : index
    %c0_91 = arith.constant 0 : index
    %100 = vector.load %arg6[%c4_89, %c0_90, %c0_91] : memref<32x16x64xf32, #tpu.memory_space<vmem>>, vector<1x16x64xf32>
    %101 = vector.shape_cast %100 : vector<1x16x64xf32> to vector<16x64xf32>
    %cst_92 = arith.constant dense<0.000000e+00> : vector<1x64xf32>
    %102 = tpu.matmul %99, %101, %cst_92 {dimension_numbers = #tpu.dot_dimension_numbers<[1], [0], [0], [1], [0, 0, 1, 1], [], []>} : vector<1x16xf32>, vector<16x64xf32>, vector<1x64xf32> -> vector<1x64xf32>
    %103 = arith.addf %98, %102 : vector<1x64xf32>
    %104 = vector.extract_strided_slice %77 {offsets = [5, 0], sizes = [1, 16], strides = [1, 1]} : vector<32x16xf32> to vector<1x16xf32>
    %c5_93 = arith.constant 5 : index
    %c0_94 = arith.constant 0 : index
    %c0_95 = arith.constant 0 : index
    %105 = vector.load %arg6[%c5_93, %c0_94, %c0_95] : memref<32x16x64xf32, #tpu.memory_space<vmem>>, vector<1x16x64xf32>
    %106 = vector.shape_cast %105 : vector<1x16x64xf32> to vector<16x64xf32>
    %cst_96 = arith.constant dense<0.000000e+00> : vector<1x64xf32>
    %107 = tpu.matmul %104, %106, %cst_96 {dimension_numbers = #tpu.dot_dimension_numbers<[1], [0], [0], [1], [0, 0, 1, 1], [], []>} : vector<1x16xf32>, vector<16x64xf32>, vector<1x64xf32> -> vector<1x64xf32>
    %108 = arith.addf %103, %107 : vector<1x64xf32>
    %109 = vector.extract_strided_slice %77 {offsets = [6, 0], sizes = [1, 16], strides = [1, 1]} : vector<32x16xf32> to vector<1x16xf32>
    %c6_97 = arith.constant 6 : index
    %c0_98 = arith.constant 0 : index
    %c0_99 = arith.constant 0 : index
    %110 = vector.load %arg6[%c6_97, %c0_98, %c0_99] : memref<32x16x64xf32, #tpu.memory_space<vmem>>, vector<1x16x64xf32>
    %111 = vector.shape_cast %110 : vector<1x16x64xf32> to vector<16x64xf32>
    %cst_100 = arith.constant dense<0.000000e+00> : vector<1x64xf32>
    %112 = tpu.matmul %109, %111, %cst_100 {dimension_numbers = #tpu.dot_dimension_numbers<[1], [0], [0], [1], [0, 0, 1, 1], [], []>} : vector<1x16xf32>, vector<16x64xf32>, vector<1x64xf32> -> vector<1x64xf32>
    %113 = arith.addf %108, %112 : vector<1x64xf32>
    %114 = vector.extract_strided_slice %77 {offsets = [7, 0], sizes = [1, 16], strides = [1, 1]} : vector<32x16xf32> to vector<1x16xf32>
    %c7 = arith.constant 7 : index
    %c0_101 = arith.constant 0 : index
    %c0_102 = arith.constant 0 : index
    %115 = vector.load %arg6[%c7, %c0_101, %c0_102] : memref<32x16x64xf32, #tpu.memory_space<vmem>>, vector<1x16x64xf32>
    %116 = vector.shape_cast %115 : vector<1x16x64xf32> to vector<16x64xf32>
    %cst_103 = arith.constant dense<0.000000e+00> : vector<1x64xf32>
    %117 = tpu.matmul %114, %116, %cst_103 {dimension_numbers = #tpu.dot_dimension_numbers<[1], [0], [0], [1], [0, 0, 1, 1], [], []>} : vector<1x16xf32>, vector<16x64xf32>, vector<1x64xf32> -> vector<1x64xf32>
    %118 = arith.addf %113, %117 : vector<1x64xf32>
    %119 = vector.extract_strided_slice %77 {offsets = [8, 0], sizes = [1, 16], strides = [1, 1]} : vector<32x16xf32> to vector<1x16xf32>
    %c8 = arith.constant 8 : index
    %c0_104 = arith.constant 0 : index
    %c0_105 = arith.constant 0 : index
    %120 = vector.load %arg6[%c8, %c0_104, %c0_105] : memref<32x16x64xf32, #tpu.memory_space<vmem>>, vector<1x16x64xf32>
    %121 = vector.shape_cast %120 : vector<1x16x64xf32> to vector<16x64xf32>
    %cst_106 = arith.constant dense<0.000000e+00> : vector<1x64xf32>
    %122 = tpu.matmul %119, %121, %cst_106 {dimension_numbers = #tpu.dot_dimension_numbers<[1], [0], [0], [1], [0, 0, 1, 1], [], []>} : vector<1x16xf32>, vector<16x64xf32>, vector<1x64xf32> -> vector<1x64xf32>
    %123 = arith.addf %118, %122 : vector<1x64xf32>
    %124 = vector.extract_strided_slice %77 {offsets = [9, 0], sizes = [1, 16], strides = [1, 1]} : vector<32x16xf32> to vector<1x16xf32>
    %c9 = arith.constant 9 : index
    %c0_107 = arith.constant 0 : index
    %c0_108 = arith.constant 0 : index
    %125 = vector.load %arg6[%c9, %c0_107, %c0_108] : memref<32x16x64xf32, #tpu.memory_space<vmem>>, vector<1x16x64xf32>
    %126 = vector.shape_cast %125 : vector<1x16x64xf32> to vector<16x64xf32>
    %cst_109 = arith.constant dense<0.000000e+00> : vector<1x64xf32>
    %127 = tpu.matmul %124, %126, %cst_109 {dimension_numbers = #tpu.dot_dimension_numbers<[1], [0], [0], [1], [0, 0, 1, 1], [], []>} : vector<1x16xf32>, vector<16x64xf32>, vector<1x64xf32> -> vector<1x64xf32>
    %128 = arith.addf %123, %127 : vector<1x64xf32>
    %129 = vector.extract_strided_slice %77 {offsets = [10, 0], sizes = [1, 16], strides = [1, 1]} : vector<32x16xf32> to vector<1x16xf32>
    %c10 = arith.constant 10 : index
    %c0_110 = arith.constant 0 : index
    %c0_111 = arith.constant 0 : index
    %130 = vector.load %arg6[%c10, %c0_110, %c0_111] : memref<32x16x64xf32, #tpu.memory_space<vmem>>, vector<1x16x64xf32>
    %131 = vector.shape_cast %130 : vector<1x16x64xf32> to vector<16x64xf32>
    %cst_112 = arith.constant dense<0.000000e+00> : vector<1x64xf32>
    %132 = tpu.matmul %129, %131, %cst_112 {dimension_numbers = #tpu.dot_dimension_numbers<[1], [0], [0], [1], [0, 0, 1, 1], [], []>} : vector<1x16xf32>, vector<16x64xf32>, vector<1x64xf32> -> vector<1x64xf32>
    %133 = arith.addf %128, %132 : vector<1x64xf32>
    %134 = vector.extract_strided_slice %77 {offsets = [11, 0], sizes = [1, 16], strides = [1, 1]} : vector<32x16xf32> to vector<1x16xf32>
    %c11 = arith.constant 11 : index
    %c0_113 = arith.constant 0 : index
    %c0_114 = arith.constant 0 : index
    %135 = vector.load %arg6[%c11, %c0_113, %c0_114] : memref<32x16x64xf32, #tpu.memory_space<vmem>>, vector<1x16x64xf32>
    %136 = vector.shape_cast %135 : vector<1x16x64xf32> to vector<16x64xf32>
    %cst_115 = arith.constant dense<0.000000e+00> : vector<1x64xf32>
    %137 = tpu.matmul %134, %136, %cst_115 {dimension_numbers = #tpu.dot_dimension_numbers<[1], [0], [0], [1], [0, 0, 1, 1], [], []>} : vector<1x16xf32>, vector<16x64xf32>, vector<1x64xf32> -> vector<1x64xf32>
    %138 = arith.addf %133, %137 : vector<1x64xf32>
    %139 = vector.extract_strided_slice %77 {offsets = [12, 0], sizes = [1, 16], strides = [1, 1]} : vector<32x16xf32> to vector<1x16xf32>
    %c12 = arith.constant 12 : index
    %c0_116 = arith.constant 0 : index
    %c0_117 = arith.constant 0 : index
    %140 = vector.load %arg6[%c12, %c0_116, %c0_117] : memref<32x16x64xf32, #tpu.memory_space<vmem>>, vector<1x16x64xf32>
    %141 = vector.shape_cast %140 : vector<1x16x64xf32> to vector<16x64xf32>
    %cst_118 = arith.constant dense<0.000000e+00> : vector<1x64xf32>
    %142 = tpu.matmul %139, %141, %cst_118 {dimension_numbers = #tpu.dot_dimension_numbers<[1], [0], [0], [1], [0, 0, 1, 1], [], []>} : vector<1x16xf32>, vector<16x64xf32>, vector<1x64xf32> -> vector<1x64xf32>
    %143 = arith.addf %138, %142 : vector<1x64xf32>
    %144 = vector.extract_strided_slice %77 {offsets = [13, 0], sizes = [1, 16], strides = [1, 1]} : vector<32x16xf32> to vector<1x16xf32>
    %c13 = arith.constant 13 : index
    %c0_119 = arith.constant 0 : index
    %c0_120 = arith.constant 0 : index
    %145 = vector.load %arg6[%c13, %c0_119, %c0_120] : memref<32x16x64xf32, #tpu.memory_space<vmem>>, vector<1x16x64xf32>
    %146 = vector.shape_cast %145 : vector<1x16x64xf32> to vector<16x64xf32>
    %cst_121 = arith.constant dense<0.000000e+00> : vector<1x64xf32>
    %147 = tpu.matmul %144, %146, %cst_121 {dimension_numbers = #tpu.dot_dimension_numbers<[1], [0], [0], [1], [0, 0, 1, 1], [], []>} : vector<1x16xf32>, vector<16x64xf32>, vector<1x64xf32> -> vector<1x64xf32>
    %148 = arith.addf %143, %147 : vector<1x64xf32>
    %149 = vector.extract_strided_slice %77 {offsets = [14, 0], sizes = [1, 16], strides = [1, 1]} : vector<32x16xf32> to vector<1x16xf32>
    %c14 = arith.constant 14 : index
    %c0_122 = arith.constant 0 : index
    %c0_123 = arith.constant 0 : index
    %150 = vector.load %arg6[%c14, %c0_122, %c0_123] : memref<32x16x64xf32, #tpu.memory_space<vmem>>, vector<1x16x64xf32>
    %151 = vector.shape_cast %150 : vector<1x16x64xf32> to vector<16x64xf32>
    %cst_124 = arith.constant dense<0.000000e+00> : vector<1x64xf32>
    %152 = tpu.matmul %149, %151, %cst_124 {dimension_numbers = #tpu.dot_dimension_numbers<[1], [0], [0], [1], [0, 0, 1, 1], [], []>} : vector<1x16xf32>, vector<16x64xf32>, vector<1x64xf32> -> vector<1x64xf32>
    %153 = arith.addf %148, %152 : vector<1x64xf32>
    %154 = vector.extract_strided_slice %77 {offsets = [15, 0], sizes = [1, 16], strides = [1, 1]} : vector<32x16xf32> to vector<1x16xf32>
    %c15 = arith.constant 15 : index
    %c0_125 = arith.constant 0 : index
    %c0_126 = arith.constant 0 : index
    %155 = vector.load %arg6[%c15, %c0_125, %c0_126] : memref<32x16x64xf32, #tpu.memory_space<vmem>>, vector<1x16x64xf32>
    %156 = vector.shape_cast %155 : vector<1x16x64xf32> to vector<16x64xf32>
    %cst_127 = arith.constant dense<0.000000e+00> : vector<1x64xf32>
    %157 = tpu.matmul %154, %156, %cst_127 {dimension_numbers = #tpu.dot_dimension_numbers<[1], [0], [0], [1], [0, 0, 1, 1], [], []>} : vector<1x16xf32>, vector<16x64xf32>, vector<1x64xf32> -> vector<1x64xf32>
    %158 = arith.addf %153, %157 : vector<1x64xf32>
    %159 = vector.extract_strided_slice %77 {offsets = [16, 0], sizes = [1, 16], strides = [1, 1]} : vector<32x16xf32> to vector<1x16xf32>
    %c16 = arith.constant 16 : index
    %c0_128 = arith.constant 0 : index
    %c0_129 = arith.constant 0 : index
    %160 = vector.load %arg6[%c16, %c0_128, %c0_129] : memref<32x16x64xf32, #tpu.memory_space<vmem>>, vector<1x16x64xf32>
    %161 = vector.shape_cast %160 : vector<1x16x64xf32> to vector<16x64xf32>
    %cst_130 = arith.constant dense<0.000000e+00> : vector<1x64xf32>
    %162 = tpu.matmul %159, %161, %cst_130 {dimension_numbers = #tpu.dot_dimension_numbers<[1], [0], [0], [1], [0, 0, 1, 1], [], []>} : vector<1x16xf32>, vector<16x64xf32>, vector<1x64xf32> -> vector<1x64xf32>
    %163 = arith.addf %158, %162 : vector<1x64xf32>
    %164 = vector.extract_strided_slice %77 {offsets = [17, 0], sizes = [1, 16], strides = [1, 1]} : vector<32x16xf32> to vector<1x16xf32>
    %c17 = arith.constant 17 : index
    %c0_131 = arith.constant 0 : index
    %c0_132 = arith.constant 0 : index
    %165 = vector.load %arg6[%c17, %c0_131, %c0_132] : memref<32x16x64xf32, #tpu.memory_space<vmem>>, vector<1x16x64xf32>
    %166 = vector.shape_cast %165 : vector<1x16x64xf32> to vector<16x64xf32>
    %cst_133 = arith.constant dense<0.000000e+00> : vector<1x64xf32>
    %167 = tpu.matmul %164, %166, %cst_133 {dimension_numbers = #tpu.dot_dimension_numbers<[1], [0], [0], [1], [0, 0, 1, 1], [], []>} : vector<1x16xf32>, vector<16x64xf32>, vector<1x64xf32> -> vector<1x64xf32>
    %168 = arith.addf %163, %167 : vector<1x64xf32>
    %169 = vector.extract_strided_slice %77 {offsets = [18, 0], sizes = [1, 16], strides = [1, 1]} : vector<32x16xf32> to vector<1x16xf32>
    %c18 = arith.constant 18 : index
    %c0_134 = arith.constant 0 : index
    %c0_135 = arith.constant 0 : index
    %170 = vector.load %arg6[%c18, %c0_134, %c0_135] : memref<32x16x64xf32, #tpu.memory_space<vmem>>, vector<1x16x64xf32>
    %171 = vector.shape_cast %170 : vector<1x16x64xf32> to vector<16x64xf32>
    %cst_136 = arith.constant dense<0.000000e+00> : vector<1x64xf32>
    %172 = tpu.matmul %169, %171, %cst_136 {dimension_numbers = #tpu.dot_dimension_numbers<[1], [0], [0], [1], [0, 0, 1, 1], [], []>} : vector<1x16xf32>, vector<16x64xf32>, vector<1x64xf32> -> vector<1x64xf32>
    %173 = arith.addf %168, %172 : vector<1x64xf32>
    %174 = vector.extract_strided_slice %77 {offsets = [19, 0], sizes = [1, 16], strides = [1, 1]} : vector<32x16xf32> to vector<1x16xf32>
    %c19 = arith.constant 19 : index
    %c0_137 = arith.constant 0 : index
    %c0_138 = arith.constant 0 : index
    %175 = vector.load %arg6[%c19, %c0_137, %c0_138] : memref<32x16x64xf32, #tpu.memory_space<vmem>>, vector<1x16x64xf32>
    %176 = vector.shape_cast %175 : vector<1x16x64xf32> to vector<16x64xf32>
    %cst_139 = arith.constant dense<0.000000e+00> : vector<1x64xf32>
    %177 = tpu.matmul %174, %176, %cst_139 {dimension_numbers = #tpu.dot_dimension_numbers<[1], [0], [0], [1], [0, 0, 1, 1], [], []>} : vector<1x16xf32>, vector<16x64xf32>, vector<1x64xf32> -> vector<1x64xf32>
    %178 = arith.addf %173, %177 : vector<1x64xf32>
    %179 = vector.extract_strided_slice %77 {offsets = [20, 0], sizes = [1, 16], strides = [1, 1]} : vector<32x16xf32> to vector<1x16xf32>
    %c20 = arith.constant 20 : index
    %c0_140 = arith.constant 0 : index
    %c0_141 = arith.constant 0 : index
    %180 = vector.load %arg6[%c20, %c0_140, %c0_141] : memref<32x16x64xf32, #tpu.memory_space<vmem>>, vector<1x16x64xf32>
    %181 = vector.shape_cast %180 : vector<1x16x64xf32> to vector<16x64xf32>
    %cst_142 = arith.constant dense<0.000000e+00> : vector<1x64xf32>
    %182 = tpu.matmul %179, %181, %cst_142 {dimension_numbers = #tpu.dot_dimension_numbers<[1], [0], [0], [1], [0, 0, 1, 1], [], []>} : vector<1x16xf32>, vector<16x64xf32>, vector<1x64xf32> -> vector<1x64xf32>
    %183 = arith.addf %178, %182 : vector<1x64xf32>
    %184 = vector.extract_strided_slice %77 {offsets = [21, 0], sizes = [1, 16], strides = [1, 1]} : vector<32x16xf32> to vector<1x16xf32>
    %c21 = arith.constant 21 : index
    %c0_143 = arith.constant 0 : index
    %c0_144 = arith.constant 0 : index
    %185 = vector.load %arg6[%c21, %c0_143, %c0_144] : memref<32x16x64xf32, #tpu.memory_space<vmem>>, vector<1x16x64xf32>
    %186 = vector.shape_cast %185 : vector<1x16x64xf32> to vector<16x64xf32>
    %cst_145 = arith.constant dense<0.000000e+00> : vector<1x64xf32>
    %187 = tpu.matmul %184, %186, %cst_145 {dimension_numbers = #tpu.dot_dimension_numbers<[1], [0], [0], [1], [0, 0, 1, 1], [], []>} : vector<1x16xf32>, vector<16x64xf32>, vector<1x64xf32> -> vector<1x64xf32>
    %188 = arith.addf %183, %187 : vector<1x64xf32>
    %189 = vector.extract_strided_slice %77 {offsets = [22, 0], sizes = [1, 16], strides = [1, 1]} : vector<32x16xf32> to vector<1x16xf32>
    %c22 = arith.constant 22 : index
    %c0_146 = arith.constant 0 : index
    %c0_147 = arith.constant 0 : index
    %190 = vector.load %arg6[%c22, %c0_146, %c0_147] : memref<32x16x64xf32, #tpu.memory_space<vmem>>, vector<1x16x64xf32>
    %191 = vector.shape_cast %190 : vector<1x16x64xf32> to vector<16x64xf32>
    %cst_148 = arith.constant dense<0.000000e+00> : vector<1x64xf32>
    %192 = tpu.matmul %189, %191, %cst_148 {dimension_numbers = #tpu.dot_dimension_numbers<[1], [0], [0], [1], [0, 0, 1, 1], [], []>} : vector<1x16xf32>, vector<16x64xf32>, vector<1x64xf32> -> vector<1x64xf32>
    %193 = arith.addf %188, %192 : vector<1x64xf32>
    %194 = vector.extract_strided_slice %77 {offsets = [23, 0], sizes = [1, 16], strides = [1, 1]} : vector<32x16xf32> to vector<1x16xf32>
    %c23 = arith.constant 23 : index
    %c0_149 = arith.constant 0 : index
    %c0_150 = arith.constant 0 : index
    %195 = vector.load %arg6[%c23, %c0_149, %c0_150] : memref<32x16x64xf32, #tpu.memory_space<vmem>>, vector<1x16x64xf32>
    %196 = vector.shape_cast %195 : vector<1x16x64xf32> to vector<16x64xf32>
    %cst_151 = arith.constant dense<0.000000e+00> : vector<1x64xf32>
    %197 = tpu.matmul %194, %196, %cst_151 {dimension_numbers = #tpu.dot_dimension_numbers<[1], [0], [0], [1], [0, 0, 1, 1], [], []>} : vector<1x16xf32>, vector<16x64xf32>, vector<1x64xf32> -> vector<1x64xf32>
    %198 = arith.addf %193, %197 : vector<1x64xf32>
    %199 = vector.extract_strided_slice %77 {offsets = [24, 0], sizes = [1, 16], strides = [1, 1]} : vector<32x16xf32> to vector<1x16xf32>
    %c24 = arith.constant 24 : index
    %c0_152 = arith.constant 0 : index
    %c0_153 = arith.constant 0 : index
    %200 = vector.load %arg6[%c24, %c0_152, %c0_153] : memref<32x16x64xf32, #tpu.memory_space<vmem>>, vector<1x16x64xf32>
    %201 = vector.shape_cast %200 : vector<1x16x64xf32> to vector<16x64xf32>
    %cst_154 = arith.constant dense<0.000000e+00> : vector<1x64xf32>
    %202 = tpu.matmul %199, %201, %cst_154 {dimension_numbers = #tpu.dot_dimension_numbers<[1], [0], [0], [1], [0, 0, 1, 1], [], []>} : vector<1x16xf32>, vector<16x64xf32>, vector<1x64xf32> -> vector<1x64xf32>
    %203 = arith.addf %198, %202 : vector<1x64xf32>
    %204 = vector.extract_strided_slice %77 {offsets = [25, 0], sizes = [1, 16], strides = [1, 1]} : vector<32x16xf32> to vector<1x16xf32>
    %c25 = arith.constant 25 : index
    %c0_155 = arith.constant 0 : index
    %c0_156 = arith.constant 0 : index
    %205 = vector.load %arg6[%c25, %c0_155, %c0_156] : memref<32x16x64xf32, #tpu.memory_space<vmem>>, vector<1x16x64xf32>
    %206 = vector.shape_cast %205 : vector<1x16x64xf32> to vector<16x64xf32>
    %cst_157 = arith.constant dense<0.000000e+00> : vector<1x64xf32>
    %207 = tpu.matmul %204, %206, %cst_157 {dimension_numbers = #tpu.dot_dimension_numbers<[1], [0], [0], [1], [0, 0, 1, 1], [], []>} : vector<1x16xf32>, vector<16x64xf32>, vector<1x64xf32> -> vector<1x64xf32>
    %208 = arith.addf %203, %207 : vector<1x64xf32>
    %209 = vector.extract_strided_slice %77 {offsets = [26, 0], sizes = [1, 16], strides = [1, 1]} : vector<32x16xf32> to vector<1x16xf32>
    %c26 = arith.constant 26 : index
    %c0_158 = arith.constant 0 : index
    %c0_159 = arith.constant 0 : index
    %210 = vector.load %arg6[%c26, %c0_158, %c0_159] : memref<32x16x64xf32, #tpu.memory_space<vmem>>, vector<1x16x64xf32>
    %211 = vector.shape_cast %210 : vector<1x16x64xf32> to vector<16x64xf32>
    %cst_160 = arith.constant dense<0.000000e+00> : vector<1x64xf32>
    %212 = tpu.matmul %209, %211, %cst_160 {dimension_numbers = #tpu.dot_dimension_numbers<[1], [0], [0], [1], [0, 0, 1, 1], [], []>} : vector<1x16xf32>, vector<16x64xf32>, vector<1x64xf32> -> vector<1x64xf32>
    %213 = arith.addf %208, %212 : vector<1x64xf32>
    %214 = vector.extract_strided_slice %77 {offsets = [27, 0], sizes = [1, 16], strides = [1, 1]} : vector<32x16xf32> to vector<1x16xf32>
    %c27 = arith.constant 27 : index
    %c0_161 = arith.constant 0 : index
    %c0_162 = arith.constant 0 : index
    %215 = vector.load %arg6[%c27, %c0_161, %c0_162] : memref<32x16x64xf32, #tpu.memory_space<vmem>>, vector<1x16x64xf32>
    %216 = vector.shape_cast %215 : vector<1x16x64xf32> to vector<16x64xf32>
    %cst_163 = arith.constant dense<0.000000e+00> : vector<1x64xf32>
    %217 = tpu.matmul %214, %216, %cst_163 {dimension_numbers = #tpu.dot_dimension_numbers<[1], [0], [0], [1], [0, 0, 1, 1], [], []>} : vector<1x16xf32>, vector<16x64xf32>, vector<1x64xf32> -> vector<1x64xf32>
    %218 = arith.addf %213, %217 : vector<1x64xf32>
    %219 = vector.extract_strided_slice %77 {offsets = [28, 0], sizes = [1, 16], strides = [1, 1]} : vector<32x16xf32> to vector<1x16xf32>
    %c28 = arith.constant 28 : index
    %c0_164 = arith.constant 0 : index
    %c0_165 = arith.constant 0 : index
    %220 = vector.load %arg6[%c28, %c0_164, %c0_165] : memref<32x16x64xf32, #tpu.memory_space<vmem>>, vector<1x16x64xf32>
    %221 = vector.shape_cast %220 : vector<1x16x64xf32> to vector<16x64xf32>
    %cst_166 = arith.constant dense<0.000000e+00> : vector<1x64xf32>
    %222 = tpu.matmul %219, %221, %cst_166 {dimension_numbers = #tpu.dot_dimension_numbers<[1], [0], [0], [1], [0, 0, 1, 1], [], []>} : vector<1x16xf32>, vector<16x64xf32>, vector<1x64xf32> -> vector<1x64xf32>
    %223 = arith.addf %218, %222 : vector<1x64xf32>
    %224 = vector.extract_strided_slice %77 {offsets = [29, 0], sizes = [1, 16], strides = [1, 1]} : vector<32x16xf32> to vector<1x16xf32>
    %c29 = arith.constant 29 : index
    %c0_167 = arith.constant 0 : index
    %c0_168 = arith.constant 0 : index
    %225 = vector.load %arg6[%c29, %c0_167, %c0_168] : memref<32x16x64xf32, #tpu.memory_space<vmem>>, vector<1x16x64xf32>
    %226 = vector.shape_cast %225 : vector<1x16x64xf32> to vector<16x64xf32>
    %cst_169 = arith.constant dense<0.000000e+00> : vector<1x64xf32>
    %227 = tpu.matmul %224, %226, %cst_169 {dimension_numbers = #tpu.dot_dimension_numbers<[1], [0], [0], [1], [0, 0, 1, 1], [], []>} : vector<1x16xf32>, vector<16x64xf32>, vector<1x64xf32> -> vector<1x64xf32>
    %228 = arith.addf %223, %227 : vector<1x64xf32>
    %229 = vector.extract_strided_slice %77 {offsets = [30, 0], sizes = [1, 16], strides = [1, 1]} : vector<32x16xf32> to vector<1x16xf32>
    %c30 = arith.constant 30 : index
    %c0_170 = arith.constant 0 : index
    %c0_171 = arith.constant 0 : index
    %230 = vector.load %arg6[%c30, %c0_170, %c0_171] : memref<32x16x64xf32, #tpu.memory_space<vmem>>, vector<1x16x64xf32>
    %231 = vector.shape_cast %230 : vector<1x16x64xf32> to vector<16x64xf32>
    %cst_172 = arith.constant dense<0.000000e+00> : vector<1x64xf32>
    %232 = tpu.matmul %229, %231, %cst_172 {dimension_numbers = #tpu.dot_dimension_numbers<[1], [0], [0], [1], [0, 0, 1, 1], [], []>} : vector<1x16xf32>, vector<16x64xf32>, vector<1x64xf32> -> vector<1x64xf32>
    %233 = arith.addf %228, %232 : vector<1x64xf32>
    %234 = vector.extract_strided_slice %77 {offsets = [31, 0], sizes = [1, 16], strides = [1, 1]} : vector<32x16xf32> to vector<1x16xf32>
    %c31 = arith.constant 31 : index
    %c0_173 = arith.constant 0 : index
    %c0_174 = arith.constant 0 : index
    %235 = vector.load %arg6[%c31, %c0_173, %c0_174] : memref<32x16x64xf32, #tpu.memory_space<vmem>>, vector<1x16x64xf32>
    %236 = vector.shape_cast %235 : vector<1x16x64xf32> to vector<16x64xf32>
    %cst_175 = arith.constant dense<0.000000e+00> : vector<1x64xf32>
    %237 = tpu.matmul %234, %236, %cst_175 {dimension_numbers = #tpu.dot_dimension_numbers<[1], [0], [0], [1], [0, 0, 1, 1], [], []>} : vector<1x16xf32>, vector<16x64xf32>, vector<1x64xf32> -> vector<1x64xf32>
    %238 = arith.addf %233, %237 : vector<1x64xf32>
    %239 = arith.addf %238, %6 : vector<1x64xf32>
    %cst_176 = arith.constant 0.000000e+00 : f32
    %240 = vector.broadcast %cst_176 : f32 to vector<1x64xf32>
    %241 = arith.maximumf %239, %240 : vector<1x64xf32>
    %242 = arith.mulf %241, %7 : vector<1x64xf32>
    %cst_177 = arith.constant dense<0.000000e+00> : vector<1xf32>
    %243 = vector.multi_reduction <add>, %242, %cst_177 [1] : vector<1x64xf32> to vector<1xf32>
    %244 = vector.shape_cast %243 : vector<1xf32> to vector<1x1xf32>
    %245 = arith.addf %244, %8 : vector<1x1xf32>
    %cst_178 = arith.constant 0.000000e+00 : f32
    %246 = vector.broadcast %cst_178 : f32 to vector<1x1xf32>
    %247 = arith.subf %246, %245 : vector<1x1xf32>
    %248 = math.exp %247 : vector<1x1xf32>
    %cst_179 = arith.constant 1.000000e+00 : f32
    %249 = vector.broadcast %cst_179 : f32 to vector<1x1xf32>
    %250 = arith.addf %249, %248 : vector<1x1xf32>
    %cst_180 = arith.constant 1.000000e+00 : f32
    %251 = vector.broadcast %cst_180 : f32 to vector<1x1xf32>
    %252 = arith.divf %251, %250 : vector<1x1xf32>
    %c0_181 = arith.constant 0 : index
    %c0_182 = arith.constant 0 : index
    %c0_183 = arith.constant 0 : index
    %253 = vector.load %arg10[%c0_181, %c0_182, %c0_183] : memref<1x1x1xf32, #tpu.memory_space<vmem>>, vector<1x1x1xf32>
    %254 = vector.shape_cast %253 : vector<1x1x1xf32> to vector<1x1xf32>
    %255 = vector.shape_cast %252 : vector<1x1xf32> to vector<1x1x1xf32>
    tpu.vector_store %arg10[%c0_181, %c0_182, %c0_183], %255 {strides = array<i32>} : memref<1x1x1xf32, #tpu.memory_space<vmem>>, vector<1x1x1xf32>,
    return
  }
  func.func @transform_0(%arg0: i32) -> (i32, i32, i32) {
    %c0_i32 = arith.constant 0 : i32
    %c0_i32_0 = arith.constant 0 : i32
    %c0_i32_1 = arith.constant 0 : i32
    return %arg0, %c0_i32, %c0_i32_0 : i32, i32, i32
  }
  func.func @transform_1(%arg0: i32) -> (i32, i32) {
    %c0_i32 = arith.constant 0 : i32
    %c0_i32_0 = arith.constant 0 : i32
    %c0_i32_1 = arith.constant 0 : i32
    return %c0_i32, %c0_i32_0 : i32, i32
  }
  func.func @transform_2(%arg0: i32) -> (i32, i32) {
    %c0_i32 = arith.constant 0 : i32
    %c0_i32_0 = arith.constant 0 : i32
    %c0_i32_1 = arith.constant 0 : i32
    return %c0_i32, %c0_i32_0 : i32, i32
  }
  func.func @transform_3(%arg0: i32) -> (i32, i32, i32) {
    %c0_i32 = arith.constant 0 : i32
    %c0_i32_0 = arith.constant 0 : i32
    %c0_i32_1 = arith.constant 0 : i32
    %c0_i32_2 = arith.constant 0 : i32
    return %c0_i32, %c0_i32_0, %c0_i32_1 : i32, i32, i32
  }
  func.func @transform_4(%arg0: i32) -> (i32, i32) {
    %c0_i32 = arith.constant 0 : i32
    %c0_i32_0 = arith.constant 0 : i32
    %c0_i32_1 = arith.constant 0 : i32
    return %c0_i32, %c0_i32_0 : i32, i32
  }
  func.func @transform_5(%arg0: i32) -> (i32, i32, i32) {
    %c0_i32 = arith.constant 0 : i32
    %c0_i32_0 = arith.constant 0 : i32
    %c0_i32_1 = arith.constant 0 : i32
    %c0_i32_2 = arith.constant 0 : i32
    return %c0_i32, %c0_i32_0, %c0_i32_1 : i32, i32, i32
  }
  func.func @transform_6(%arg0: i32) -> (i32, i32) {
    %c0_i32 = arith.constant 0 : i32
    %c0_i32_0 = arith.constant 0 : i32
    %c0_i32_1 = arith.constant 0 : i32
    return %c0_i32, %c0_i32_0 : i32, i32
  }
  func.func @transform_7(%arg0: i32) -> (i32, i32) {
    %c0_i32 = arith.constant 0 : i32
    %c0_i32_0 = arith.constant 0 : i32
    %c0_i32_1 = arith.constant 0 : i32
    return %c0_i32, %c0_i32_0 : i32, i32
  }
  func.func @transform_8(%arg0: i32) -> (i32, i32) {
    %c0_i32 = arith.constant 0 : i32
    %c0_i32_0 = arith.constant 0 : i32
    %c0_i32_1 = arith.constant 0 : i32
    return %c0_i32, %c0_i32_0 : i32, i32
  }
  func.func @transform_9(%arg0: i32) -> (i32, i32, i32) {
    %c0_i32 = arith.constant 0 : i32
    %c0_i32_0 = arith.constant 0 : i32
    %c0_i32_1 = arith.constant 0 : i32
    return %arg0, %c0_i32, %c0_i32_0 : i32, i32, i32
  }
}

</mosaic_0001>

<llo_original>
// kernel: forward.1
$region0: #{forward.1}
  #allocation0 [shape = 'u32[]', space=smem, size = 0x4, offset = 0x4, fixed_abs, tag = 'smem constant byte address 0x4 - core index']
  #allocation1 [shape = 'u32[72,128]{1,0:T(1,128)}', space=vmem, size = 0x9000, scoped, tag = 'internal scratch']
  #allocation2 [shape = 'f32[136,16]{1,0:T(8,128)}', space=vmem, size = 0x11000, scoped, tag = 'scratch operand']
  #allocation3 [shape = 'f32[1,1]{1,0:T(1,128)S(1)}', space=vmem, size = 0x200, scoped, tag = 'scoped memory for forward.1']
  %s0 = inlined_call_operand.vmem [shape: f32[2,254,11], index: 0, kind: input, shape index: {}]
  %s1 = inlined_call_operand.vmem [shape: f32[11,16], index: 1, kind: input, shape index: {}]
  %s2 = inlined_call_operand.vmem [shape: f32[1,16], index: 2, kind: input, shape index: {}]
  %s3 = inlined_call_operand.vmem [shape: f32[5,16,16], index: 3, kind: input, shape index: {}]
  %s4 = inlined_call_operand.vmem [shape: f32[1,16], index: 4, kind: input, shape index: {}]
  %s5 = inlined_call_operand.vmem [shape: f32[32,16,64], index: 5, kind: input, shape index: {}]
  %s6 = inlined_call_operand.vmem [shape: f32[1,64], index: 6, kind: input, shape index: {}]
  %s7 = inlined_call_operand.vmem [shape: f32[1,64], index: 7, kind: input, shape index: {}]
  %s8 = inlined_call_operand.<no memory space> [shape: f32[1,1], index: 8, kind: input, shape index: {}]
  %s9 = inlined_call_operand.vmem [shape: f32[2,1,1], index: 9, kind: output, shape index: {}]
  %s10 = sld [smem:[#allocation0]]
  $region69: #{forward.1} parent=0
    _
  %s12 = ssub.s32 1, %s10
  %s13 = scalar_select 0, %s12, %s10
  %v14 = vstv %s8
  %15 = vst [vmem:[#allocation3] sm:$0x1] %v14
  loop: start=0, step=1, limit=4
  $region2: #{forward.1} parent=0 // loop_pre_header
    _
  $region3: #{forward.1} parent=0 // loop_header
    %s17 = sphi 0, %s21
    %p18 = scmp.ge.s32.totalorder %s17, 4
    %s27 = sphi 0, %s29
    %s30 = sphi 0, %s27
    %s31 = sphi 0, %s30
    %s47 = sphi 0, %s31
    %s51 = sphi 0, %s51
    %s53 = sphi 0, %s51
    %s54 = sphi 0, %s53
    %s68 = sphi 0, %s54
    %s72 = sphi 0, %s72
    %s74 = sphi 0, %s72
    %s75 = sphi 0, %s74
    %s89 = sphi 0, %s75
    %s93 = sphi 0, %s93
    %s95 = sphi 0, %s93
    %s96 = sphi 0, %s95
    %s110 = sphi 0, %s96
    %s114 = sphi 0, %s114
    %s116 = sphi 0, %s114
    %s117 = sphi 0, %s116
    %s131 = sphi 0, %s117
    %s135 = sphi 0, %s135
    %s137 = sphi 0, %s135
    %s138 = sphi 0, %s137
    %s152 = sphi 0, %s138
    %s156 = sphi 0, %s156
    %s158 = sphi 0, %s156
    %s159 = sphi 0, %s158
    %s173 = sphi 0, %s159
    %s177 = sphi 0, %s177
    %s179 = sphi 0, %s177
    %s180 = sphi 0, %s179
    %s194 = sphi 0, %s180
    %s198 = sphi 0, %s198
    %s200 = sphi 0, %s198
    %s201 = sphi 0, %s200
    %s215 = sphi 0, %s201
    %s221 = sphi 0, %s223
    %s224 = sphi 0, %s221
    %s225 = sphi 0, %s224
    %s241 = sphi 0, %s225
  $region4: #{forward.1} parent=0 // loop_header_branch
    %20 = sbr.rel (%p18) target = $region8
  $region5: #{forward.1} parent=0 // loop_body
    %s22 = ssub.s32 %s17, 1
    %s23 = ssub.s32 %s17, 2
    %s24 = sadd.s32 %s17, 1
    %s25 = ssub.s32 %s17, %s24
    %p26 = scmp.eq.s32.totalorder %s25, 0
    %s28 = sadd.s32 %s27, 1
    %s29 = scalar_select %p26, %s27, %s28
    %p32 = pneg %p26
    %p33 = scmp.eq.s32.totalorder %s17, 1
    %p34 = por %p32, %p33
    %p35 = scmp.ne.s32.totalorder %s27, %s30
    %p36 = scmp.eq.s32.totalorder %s17, 0
    %p37 = por %p35, %p36
    %p38 = scmp.ne.s32.totalorder %s27, %s30
    %p39 = scmp.eq.s32.totalorder %s22, 1
    %p40 = por %p38, %p39
    %p41 = scmp.ne.s32.totalorder %s30, %s31
    %p42 = scmp.eq.s32.totalorder %s22, 0
    %p43 = por %p41, %p42
    %p44 = scmp.ne.s32.totalorder %s30, %s31
    %p45 = scmp.eq.s32.totalorder %s23, 1
    %p46 = por %p44, %p45
    %p48 = scmp.ne.s32.totalorder %s31, %s47
    %p49 = scmp.eq.s32.totalorder %s23, 0
    %p50 = por %p48, %p49
    %s52 = sadd.s32 %s51, 1
    %p55 = scmp.eq.s32.totalorder %s17, 1
    %p56 = scmp.ne.s32.totalorder %s51, %s53
    %p57 = scmp.eq.s32.totalorder %s17, 0
    %p58 = por %p56, %p57
    %p59 = scmp.ne.s32.totalorder %s51, %s53
    %p60 = scmp.eq.s32.totalorder %s22, 1
    %p61 = por %p59, %p60
    %p62 = scmp.ne.s32.totalorder %s53, %s54
    %p63 = scmp.eq.s32.totalorder %s22, 0
    %p64 = por %p62, %p63
    %p65 = scmp.ne.s32.totalorder %s53, %s54
    %p66 = scmp.eq.s32.totalorder %s23, 1
    %p67 = por %p65, %p66
    %p69 = scmp.ne.s32.totalorder %s54, %s68
    %p70 = scmp.eq.s32.totalorder %s23, 0
    %p71 = por %p69, %p70
    %s73 = sadd.s32 %s72, 1
    %p76 = scmp.eq.s32.totalorder %s17, 1
    %p77 = scmp.ne.s32.totalorder %s72, %s74
    %p78 = scmp.eq.s32.totalorder %s17, 0
    %p79 = por %p77, %p78
    %p80 = scmp.ne.s32.totalorder %s72, %s74
    %p81 = scmp.eq.s32.totalorder %s22, 1
    %p82 = por %p80, %p81
    %p83 = scmp.ne.s32.totalorder %s74, %s75
    %p84 = scmp.eq.s32.totalorder %s22, 0
    %p85 = por %p83, %p84
    %p86 = scmp.ne.s32.totalorder %s74, %s75
    %p87 = scmp.eq.s32.totalorder %s23, 1
    %p88 = por %p86, %p87
    %p90 = scmp.ne.s32.totalorder %s75, %s89
    %p91 = scmp.eq.s32.totalorder %s23, 0
    %p92 = por %p90, %p91
    %s94 = sadd.s32 %s93, 1
    %p97 = scmp.eq.s32.totalorder %s17, 1
    %p98 = scmp.ne.s32.totalorder %s93, %s95
    %p99 = scmp.eq.s32.totalorder %s17, 0
    %p100 = por %p98, %p99
    %p101 = scmp.ne.s32.totalorder %s93, %s95
    %p102 = scmp.eq.s32.totalorder %s22, 1
    %p103 = por %p101, %p102
    %p104 = scmp.ne.s32.totalorder %s95, %s96
    %p105 = scmp.eq.s32.totalorder %s22, 0
    %p106 = por %p104, %p105
    %p107 = scmp.ne.s32.totalorder %s95, %s96
    %p108 = scmp.eq.s32.totalorder %s23, 1
    %p109 = por %p107, %p108
    %p111 = scmp.ne.s32.totalorder %s96, %s110
    %p112 = scmp.eq.s32.totalorder %s23, 0
    %p113 = por %p111, %p112
    %s115 = sadd.s32 %s114, 1
    %p118 = scmp.eq.s32.totalorder %s17, 1
    %p119 = scmp.ne.s32.totalorder %s114, %s116
    %p120 = scmp.eq.s32.totalorder %s17, 0
    %p121 = por %p119, %p120
    %p122 = scmp.ne.s32.totalorder %s114, %s116
    %p123 = scmp.eq.s32.totalorder %s22, 1
    %p124 = por %p122, %p123
    %p125 = scmp.ne.s32.totalorder %s116, %s117
    %p126 = scmp.eq.s32.totalorder %s22, 0
    %p127 = por %p125, %p126
    %p128 = scmp.ne.s32.totalorder %s116, %s117
    %p129 = scmp.eq.s32.totalorder %s23, 1
    %p130 = por %p128, %p129
    %p132 = scmp.ne.s32.totalorder %s117, %s131
    %p133 = scmp.eq.s32.totalorder %s23, 0
    %p134 = por %p132, %p133
    %s136 = sadd.s32 %s135, 1
    %p139 = scmp.eq.s32.totalorder %s17, 1
    %p140 = scmp.ne.s32.totalorder %s135, %s137
    %p141 = scmp.eq.s32.totalorder %s17, 0
    %p142 = por %p140, %p141
    %p143 = scmp.ne.s32.totalorder %s135, %s137
    %p144 = scmp.eq.s32.totalorder %s22, 1
    %p145 = por %p143, %p144
    %p146 = scmp.ne.s32.totalorder %s137, %s138
    %p147 = scmp.eq.s32.totalorder %s22, 0
    %p148 = por %p146, %p147
    %p149 = scmp.ne.s32.totalorder %s137, %s138
    %p150 = scmp.eq.s32.totalorder %s23, 1
    %p151 = por %p149, %p150
    %p153 = scmp.ne.s32.totalorder %s138, %s152
    %p154 = scmp.eq.s32.totalorder %s23, 0
    %p155 = por %p153, %p154
    %s157 = sadd.s32 %s156, 1
    %p160 = scmp.eq.s32.totalorder %s17, 1
    %p161 = scmp.ne.s32.totalorder %s156, %s158
    %p162 = scmp.eq.s32.totalorder %s17, 0
    %p163 = por %p161, %p162
    %p164 = scmp.ne.s32.totalorder %s156, %s158
    %p165 = scmp.eq.s32.totalorder %s22, 1
    %p166 = por %p164, %p165
    %p167 = scmp.ne.s32.totalorder %s158, %s159
    %p168 = scmp.eq.s32.totalorder %s22, 0
    %p169 = por %p167, %p168
    %p170 = scmp.ne.s32.totalorder %s158, %s159
    %p171 = scmp.eq.s32.totalorder %s23, 1
    %p172 = por %p170, %p171
    %p174 = scmp.ne.s32.totalorder %s159, %s173
    %p175 = scmp.eq.s32.totalorder %s23, 0
    %p176 = por %p174, %p175
    %s178 = sadd.s32 %s177, 1
    %p181 = scmp.eq.s32.totalorder %s17, 1
    %p182 = scmp.ne.s32.totalorder %s177, %s179
    %p183 = scmp.eq.s32.totalorder %s17, 0
    %p184 = por %p182, %p183
    %p185 = scmp.ne.s32.totalorder %s177, %s179
    %p186 = scmp.eq.s32.totalorder %s22, 1
    %p187 = por %p185, %p186
    %p188 = scmp.ne.s32.totalorder %s179, %s180
    %p189 = scmp.eq.s32.totalorder %s22, 0
    %p190 = por %p188, %p189
    %p191 = scmp.ne.s32.totalorder %s179, %s180
    %p192 = scmp.eq.s32.totalorder %s23, 1
    %p193 = por %p191, %p192
    %p195 = scmp.ne.s32.totalorder %s180, %s194
    %p196 = scmp.eq.s32.totalorder %s23, 0
    %p197 = por %p195, %p196
    %s199 = sadd.s32 %s198, 1
    %p202 = scmp.eq.s32.totalorder %s17, 1
    %p203 = scmp.ne.s32.totalorder %s198, %s200
    %p204 = scmp.eq.s32.totalorder %s17, 0
    %p205 = por %p203, %p204
    %p206 = scmp.ne.s32.totalorder %s198, %s200
    %p207 = scmp.eq.s32.totalorder %s22, 1
    %p208 = por %p206, %p207
    %p209 = scmp.ne.s32.totalorder %s200, %s201
    %p210 = scmp.eq.s32.totalorder %s22, 0
    %p211 = por %p209, %p210
    %p212 = scmp.ne.s32.totalorder %s200, %s201
    %p213 = scmp.eq.s32.totalorder %s23, 1
    %p214 = por %p212, %p213
    %p216 = scmp.ne.s32.totalorder %s201, %s215
    %p217 = scmp.eq.s32.totalorder %s23, 0
    %p218 = por %p216, %p217
    %s219 = ssub.s32 %s17, %s24
    %p220 = scmp.eq.s32.totalorder %s219, 0
    %s222 = sadd.s32 %s221, 1
    %s223 = scalar_select %p220, %s221, %s222
    %p226 = pneg %p220
    %p227 = scmp.eq.s32.totalorder %s17, 1
    %p228 = por %p226, %p227
    %p229 = scmp.ne.s32.totalorder %s221, %s224
    %p230 = scmp.eq.s32.totalorder %s17, 0
    %p231 = por %p229, %p230
    %p232 = scmp.ne.s32.totalorder %s221, %s224
    %p233 = scmp.eq.s32.totalorder %s22, 1
    %p234 = por %p232, %p233
    %p235 = scmp.ne.s32.totalorder %s224, %s225
    %p236 = scmp.eq.s32.totalorder %s22, 0
    %p237 = por %p235, %p236
    %p238 = scmp.ne.s32.totalorder %s224, %s225
    %p239 = scmp.eq.s32.totalorder %s23, 1
    %p240 = por %p238, %p239
    %p242 = scmp.ne.s32.totalorder %s225, %s241
    %p243 = scmp.eq.s32.totalorder %s23, 0
    %p244 = por %p242, %p243
    %p245 = scmp.le.s32.totalorder 1, %s17
    %p246 = scmp.lt.s32.totalorder %s17, 3
    %p247 = pnand %p245, %p246
    %p248 = pneg %p247
    // Predicated region
    $region9: #{forward.1} parent=5 // pred_check
      _
    $region10: #{forward.1} parent=5 // pred_check_branch
      %250 = sbr.rel (%p247) target = $region12
    $region11: #{forward.1} parent=5 // pred_region
      %s251 = ssub.s32 %s17, 1
      // Predicated region
      $region13: #{forward.1} parent=11 // pred_check
        %p252 = pneg %p64
      $region14: #{forward.1} parent=11 // pred_check_branch
        %254 = sbr.rel (%p252) target = $region16
      $region15: #{forward.1} parent=11 // pred_region
        _
      $region16: #{forward.1} parent=11 // pred_fallthru
        _
      // Predicated region
      $region17: #{forward.1} parent=11 // pred_check
        %p255 = pneg %p85
      $region18: #{forward.1} parent=11 // pred_check_branch
        %257 = sbr.rel (%p255) target = $region20
      $region19: #{forward.1} parent=11 // pred_region
        _
      $region20: #{forward.1} parent=11 // pred_fallthru
        _
      // Predicated region
      $region21: #{forward.1} parent=11 // pred_check
        %p258 = pneg %p106
      $region22: #{forward.1} parent=11 // pred_check_branch
        %260 = sbr.rel (%p258) target = $region24
      $region23: #{forward.1} parent=11 // pred_region
        _
      $region24: #{forward.1} parent=11 // pred_fallthru
        _
      // Predicated region
      $region25: #{forward.1} parent=11 // pred_check
        %p261 = pneg %p127
      $region26: #{forward.1} parent=11 // pred_check_branch
        %263 = sbr.rel (%p261) target = $region28
      $region27: #{forward.1} parent=11 // pred_region
        _
      $region28: #{forward.1} parent=11 // pred_fallthru
        _
      // Predicated region
      $region29: #{forward.1} parent=11 // pred_check
        %p264 = pneg %p148
      $region30: #{forward.1} parent=11 // pred_check_branch
        %266 = sbr.rel (%p264) target = $region32
      $region31: #{forward.1} parent=11 // pred_region
        _
      $region32: #{forward.1} parent=11 // pred_fallthru
        _
      // Predicated region
      $region33: #{forward.1} parent=11 // pred_check
        %p267 = pneg %p169
      $region34: #{forward.1} parent=11 // pred_check_branch
        %269 = sbr.rel (%p267) target = $region36
      $region35: #{forward.1} parent=11 // pred_region
        _
      $region36: #{forward.1} parent=11 // pred_fallthru
        _
      // Predicated region
      $region37: #{forward.1} parent=11 // pred_check
        %p270 = pneg %p190
      $region38: #{forward.1} parent=11 // pred_check_branch
        %272 = sbr.rel (%p270) target = $region40
      $region39: #{forward.1} parent=11 // pred_region
        _
      $region40: #{forward.1} parent=11 // pred_fallthru
        _
      // Predicated region
      $region41: #{forward.1} parent=11 // pred_check
        %p273 = pneg %p211
      $region42: #{forward.1} parent=11 // pred_check_branch
        %275 = sbr.rel (%p273) target = $region44
      $region43: #{forward.1} parent=11 // pred_region
        _
      $region44: #{forward.1} parent=11 // pred_fallthru
        _
    $region12: #{forward.1} parent=5 // pred_fallthru
      _
    %p276 = scmp.lt.s32.totalorder %s17, 2
    // Predicated region
    $region45: #{forward.1} parent=5 // pred_check
      %p277 = pneg %p276
    $region46: #{forward.1} parent=5 // pred_check_branch
      %279 = sbr.rel (%p277) target = $region48
    $region47: #{forward.1} parent=5 // pred_region
      // Predicated region
      $region49: #{forward.1} parent=47 // pred_check
        %p280 = pneg %p37
      $region50: #{forward.1} parent=47 // pred_check_branch
        %282 = sbr.rel (%p280) target = $region52
      $region51: #{forward.1} parent=47 // pred_region
        %p283 = scmp.lt.s32.totalorder %s17, 1
        %s284 = scalar_select %p283, %s17, 1
        %s285 = smul.addr %s284, 32
        %s286 = smul.addr %s285, 8
        %s287 = scalar_lea.vmem %s0, %s286
      $region52: #{forward.1} parent=47 // pred_fallthru
        _
    $region48: #{forward.1} parent=5 // pred_fallthru
      _
    %p288 = scmp.le.s32.totalorder 1, %s17
    %p289 = scmp.lt.s32.totalorder %s17, 3
    %p290 = pnand %p288, %p289
    %p291 = pneg %p290
    // Predicated region
    $region53: #{forward.1} parent=5 // pred_check
      _
    $region54: #{forward.1} parent=5 // pred_check_branch
      %293 = sbr.rel (%p290) target = $region56
    $region55: #{forward.1} parent=5 // pred_region
      %s294 = ssub.s32 %s17, 1
      %p295 = scmp.lt.s32.totalorder %s22, 1
      %s296 = scalar_select %p295, %s22, 1
      %s297 = smul.addr %s296, 32
      %s298 = smul.addr %s297, 8
      %s299 = scalar_lea.vmem %s0, %s298
      %p300 = pneg %p43
      %p301 = pneg %p40
      %p302 = pneg %p64
      %p303 = pneg %p61
      %p304 = pneg %p85
      %p305 = pneg %p82
      %p306 = pneg %p106
      %p307 = pneg %p103
      %p308 = pneg %p127
      %p309 = pneg %p124
      %p310 = pneg %p148
      %p311 = pneg %p145
      %p312 = pneg %p169
      %p313 = pneg %p166
      %p314 = pneg %p190
      %p315 = pneg %p187
      %p316 = pneg %p211
      %p317 = pneg %p208
      %p318 = pneg %p237
      %p319 = pneg %p234
      %p320 = scmp.lt.s32.totalorder %s22, 1
      %s321 = scalar_select %p320, %s22, 1
      %s322 = scalar_lea.vmem %s9, %s321
      %p323 = scmp.lt.s32.totalorder %s22, 1
      %s324 = scalar_select %p323, %s22, 1
      %s325 = smul.addr %s324, 32
      %s326 = smul.addr %s325, 8
      %s327 = scalar_lea.vmem %s0, %s326
      %p328 = scmp.lt.s32.totalorder %s22, 1
      %s329 = scalar_select %p328, %s22, 1
      %s330 = scalar_lea.vmem %s9, %s329
      %vm331 = vcmask 130048
      %332 = vst.msk [vmem:[#allocation2] sm:$0xff] %vm331, 0.0
      %333 = vst.msk [vmem:[#allocation2 + $0x80] sm:$0xff] %vm331, 0.0
      %v334 = vld [vmem:[%s1] sm:$0xff]
      %v335 = vld [vmem:[%s1 + $0x8] sm:$0x7]
      %v336 = vld [vmem:[%s2] sm:$0x1]
      %v337 = vld [vmem:[%s4] sm:$0x1]
      %v338 = vld [vmem:[%s6] sm:$0x1]
      %v339 = vld [vmem:[%s7] sm:$0x1]
      %v340 = vld [vmem:[#allocation3] sm:$0x1]
      %v341 = vld [vmem:[%s327] ss:$2 sm:$0xff]
      %s342 = scalar_lea.vmem %s327, 16
      %v343 = vld [vmem:[%s342] ss:$2 sm:$0xff]
      %s344 = scalar_lea.vmem %s327, 32
      %v345 = vld [vmem:[%s344] ss:$2 sm:$0xff]
      %s346 = scalar_lea.vmem %s327, 48
      %v347 = vld [vmem:[%s346] ss:$2 sm:$0xff]
      %s348 = scalar_lea.vmem %s327, 64
      %v349 = vld [vmem:[%s348] ss:$2 sm:$0xff]
      %s350 = scalar_lea.vmem %s327, 80
      %v351 = vld [vmem:[%s350] ss:$2 sm:$0xff]
      %s352 = scalar_lea.vmem %s327, 96
      %v353 = vld [vmem:[%s352] ss:$2 sm:$0xff]
      %s354 = scalar_lea.vmem %s327, 112
      %v355 = vld [vmem:[%s354] ss:$2 sm:$0xff]
      %s356 = scalar_lea.vmem %s327, 128
      %v357 = vld [vmem:[%s356] ss:$2 sm:$0xff]
      %s358 = scalar_lea.vmem %s327, 144
      %v359 = vld [vmem:[%s358] ss:$2 sm:$0xff]
      %s360 = scalar_lea.vmem %s327, 160
      %v361 = vld [vmem:[%s360] ss:$2 sm:$0xff]
      %s362 = scalar_lea.vmem %s327, 176
      %v363 = vld [vmem:[%s362] ss:$2 sm:$0xff]
      %s364 = scalar_lea.vmem %s327, 192
      %v365 = vld [vmem:[%s364] ss:$2 sm:$0xff]
      %s366 = scalar_lea.vmem %s327, 208
      %v367 = vld [vmem:[%s366] ss:$2 sm:$0xff]
      %s368 = scalar_lea.vmem %s327, 224
      %v369 = vld [vmem:[%s368] ss:$2 sm:$0xff]
      %s370 = scalar_lea.vmem %s327, 240
      %v371 = vld [vmem:[%s370] ss:$2 sm:$0x7f]
      %s372 = scalar_lea.vmem %s327, 1
      %v373 = vld [vmem:[%s372] ss:$2 sm:$0xff]
      %s374 = scalar_lea.vmem %s327, 17
      %v375 = vld [vmem:[%s374] ss:$2 sm:$0xff]
      %s376 = scalar_lea.vmem %s327, 33
      %v377 = vld [vmem:[%s376] ss:$2 sm:$0xff]
      %s378 = scalar_lea.vmem %s327, 49
      %v379 = vld [vmem:[%s378] ss:$2 sm:$0xff]
      %s380 = scalar_lea.vmem %s327, 65
      %v381 = vld [vmem:[%s380] ss:$2 sm:$0xff]
      %s382 = scalar_lea.vmem %s327, 81
      %v383 = vld [vmem:[%s382] ss:$2 sm:$0xff]
      %s384 = scalar_lea.vmem %s327, 97
      %v385 = vld [vmem:[%s384] ss:$2 sm:$0xff]
      %s386 = scalar_lea.vmem %s327, 113
      %v387 = vld [vmem:[%s386] ss:$2 sm:$0xff]
      %s388 = scalar_lea.vmem %s327, 129
      %v389 = vld [vmem:[%s388] ss:$2 sm:$0xff]
      %s390 = scalar_lea.vmem %s327, 145
      %v391 = vld [vmem:[%s390] ss:$2 sm:$0xff]
      %s392 = scalar_lea.vmem %s327, 161
      %v393 = vld [vmem:[%s392] ss:$2 sm:$0xff]
      %s394 = scalar_lea.vmem %s327, 177
      %v395 = vld [vmem:[%s394] ss:$2 sm:$0xff]
      %s396 = scalar_lea.vmem %s327, 193
      %v397 = vld [vmem:[%s396] ss:$2 sm:$0xff]
      %s398 = scalar_lea.vmem %s327, 209
      %v399 = vld [vmem:[%s398] ss:$2 sm:$0xff]
      %s400 = scalar_lea.vmem %s327, 225
      %v401 = vld [vmem:[%s400] ss:$2 sm:$0xff]
      %s402 = scalar_lea.vmem %s327, 241
      %v403 = vld [vmem:[%s402] ss:$2 sm:$0x7f]
      %v405 = vperm.slane %v336, 0
      %vm407 = vcmask 89088
      %v409 = vsel %vm407, %v341, 0
      %v412 = vsel %vm407, %v343, 0
      %v415 = vsel %vm407, %v345, 0
      %v418 = vsel %vm407, %v347, 0
      %v421 = vsel %vm407, %v349, 0
      %v424 = vsel %vm407, %v351, 0
      %v427 = vsel %vm407, %v353, 0
      %v430 = vsel %vm407, %v355, 0
      %v433 = vsel %vm407, %v357, 0
      %v436 = vsel %vm407, %v359, 0
      %v439 = vsel %vm407, %v361, 0
      %v442 = vsel %vm407, %v363, 0
      %v445 = vsel %vm407, %v365, 0
      %v448 = vsel %vm407, %v367, 0
      %v451 = vsel %vm407, %v369, 0
      %v454 = vsel %vm407, %v371, 0
      %vm456 = vcmask 1042432
      %v458 = vsel %vm456, %v335, 0
      %460 = vmatpush.msra.mxu0 0.0
      %461 = vmatpush.msra.mxu0 0.0
      %462 = vmatpush.msra.mxu0 0.0
      %463 = vmatpush.msra.mxu0 0.0
      %464 = vmatpush.msra.mxu0 0.0
      %465 = vmatpush.msra.mxu0 0.0
      %466 = vmatpush.msra.mxu0 0.0
      %467 = vmatpush.msra.mxu0 0.0
      %468 = vmatpush.msra.mxu0 0.0
      %469 = vmatpush.msra.mxu0 0.0
      %470 = vmatpush.msra.mxu0 0.0
      %471 = vmatpush.msra.mxu0 0.0
      %472 = vmatpush.msra.mxu0 0.0
      %473 = vmatpush.msra.mxu0 0.0
      %474 = vmatpush.msra.mxu0 %v458
      %475 = vmatpush.msra.mxu0 %v334
      %476 = vmatmul.f32.gmra.mxu0 %v409
      %v477 = vpop.f32.mrf.mxu0
      %v478 = vadd.f32 %v405, %v477
      %479 = vmatmul.f32.gmra.mxu0 %v412
      %v480 = vpop.f32.mrf.mxu0
      %v481 = vadd.f32 %v405, %v480
      %482 = vmatmul.f32.gmra.mxu0 %v415
      %v483 = vpop.f32.mrf.mxu0
      %v484 = vadd.f32 %v405, %v483
      %485 = vmatmul.f32.gmra.mxu0 %v418
      %v486 = vpop.f32.mrf.mxu0
      %v487 = vadd.f32 %v405, %v486
      %488 = vmatmul.f32.gmra.mxu0 %v421
      %v489 = vpop.f32.mrf.mxu0
      %v490 = vadd.f32 %v405, %v489
      %491 = vmatmul.f32.gmra.mxu0 %v424
      %v492 = vpop.f32.mrf.mxu0
      %v493 = vadd.f32 %v405, %v492
      %494 = vmatmul.f32.gmra.mxu0 %v427
      %v495 = vpop.f32.mrf.mxu0
      %v496 = vadd.f32 %v405, %v495
      %497 = vmatmul.f32.gmra.mxu0 %v430
      %v498 = vpop.f32.mrf.mxu0
      %v499 = vadd.f32 %v405, %v498
      %500 = vmatmul.f32.gmra.mxu0 %v433
      %v501 = vpop.f32.mrf.mxu0
      %v502 = vadd.f32 %v405, %v501
      %503 = vmatmul.f32.gmra.mxu0 %v436
      %v504 = vpop.f32.mrf.mxu0
      %v505 = vadd.f32 %v405, %v504
      %506 = vmatmul.f32.gmra.mxu0 %v439
      %v507 = vpop.f32.mrf.mxu0
      %v508 = vadd.f32 %v405, %v507
      %509 = vmatmul.f32.gmra.mxu0 %v442
      %v510 = vpop.f32.mrf.mxu0
      %v511 = vadd.f32 %v405, %v510
      %512 = vmatmul.f32.gmra.mxu0 %v445
      %v513 = vpop.f32.mrf.mxu0
      %v514 = vadd.f32 %v405, %v513
      %515 = vmatmul.f32.gmra.mxu0 %v448
      %v516 = vpop.f32.mrf.mxu0
      %v517 = vadd.f32 %v405, %v516
      %518 = vmatmul.f32.gmra.mxu0 %v451
      %v519 = vpop.f32.mrf.mxu0
      %v520 = vadd.f32 %v405, %v519
      %521 = vmatmul.f32.gmra.mxu0 %v454
      %v522 = vpop.f32.mrf.mxu0
      %v523 = vadd.f32 %v405, %v522
      %524 = vdwg.mxu0
      %v525 = vmax.f32 %v478, 0.0
      %v526 = vmax.f32 %v481, 0.0
      %v527 = vmax.f32 %v484, 0.0
      %v528 = vmax.f32 %v487, 0.0
      %v529 = vmax.f32 %v490, 0.0
      %v530 = vmax.f32 %v493, 0.0
      %v531 = vmax.f32 %v496, 0.0
      %v532 = vmax.f32 %v499, 0.0
      %v533 = vmax.f32 %v502, 0.0
      %v534 = vmax.f32 %v505, 0.0
      %v535 = vmax.f32 %v508, 0.0
      %v536 = vmax.f32 %v511, 0.0
      %v537 = vmax.f32 %v514, 0.0
      %v538 = vmax.f32 %v517, 0.0
      %v539 = vmax.f32 %v520, 0.0
      %v540 = vmax.f32 %v523, 0.0
      %v542 = vsel %vm407, %v373, 0
      %v545 = vsel %vm407, %v375, 0
      %v548 = vsel %vm407, %v377, 0
      %v551 = vsel %vm407, %v379, 0
      %v554 = vsel %vm407, %v381, 0
      %v557 = vsel %vm407, %v383, 0
      %v560 = vsel %vm407, %v385, 0
      %v563 = vsel %vm407, %v387, 0
      %v566 = vsel %vm407, %v389, 0
      %v569 = vsel %vm407, %v391, 0
      %v572 = vsel %vm407, %v393, 0
      %v575 = vsel %vm407, %v395, 0
      %v578 = vsel %vm407, %v397, 0
      %v581 = vsel %vm407, %v399, 0
      %v584 = vsel %vm407, %v401, 0
      %v587 = vsel %vm407, %v403, 0
      %589 = vmatpush.msra.mxu0 0.0
      %590 = vmatpush.msra.mxu0 0.0
      %591 = vmatpush.msra.mxu0 0.0
      %592 = vmatpush.msra.mxu0 0.0
      %593 = vmatpush.msra.mxu0 0.0
      %594 = vmatpush.msra.mxu0 0.0
      %595 = vmatpush.msra.mxu0 0.0
      %596 = vmatpush.msra.mxu0 0.0
      %597 = vmatpush.msra.mxu0 0.0
      %598 = vmatpush.msra.mxu0 0.0
      %599 = vmatpush.msra.mxu0 0.0
      %600 = vmatpush.msra.mxu0 0.0
      %601 = vmatpush.msra.mxu0 0.0
      %602 = vmatpush.msra.mxu0 0.0
      %603 = vmatpush.msra.mxu0 %v458
      %604 = vmatpush.msra.mxu0 %v334
      %605 = vmatmul.f32.gmra.mxu0 %v542
      %v606 = vpop.f32.mrf.mxu0
      %v607 = vadd.f32 %v405, %v606
      %608 = vmatmul.f32.gmra.mxu0 %v545
      %v609 = vpop.f32.mrf.mxu0
      %v610 = vadd.f32 %v405, %v609
      %611 = vmatmul.f32.gmra.mxu0 %v548
      %v612 = vpop.f32.mrf.mxu0
      %v613 = vadd.f32 %v405, %v612
      %614 = vmatmul.f32.gmra.mxu0 %v551
      %v615 = vpop.f32.mrf.mxu0
      %v616 = vadd.f32 %v405, %v615
      %617 = vmatmul.f32.gmra.mxu0 %v554
      %v618 = vpop.f32.mrf.mxu0
      %v619 = vadd.f32 %v405, %v618
      %620 = vmatmul.f32.gmra.mxu0 %v557
      %v621 = vpop.f32.mrf.mxu0
      %v622 = vadd.f32 %v405, %v621
      %623 = vmatmul.f32.gmra.mxu0 %v560
      %v624 = vpop.f32.mrf.mxu0
      %v625 = vadd.f32 %v405, %v624
      %626 = vmatmul.f32.gmra.mxu0 %v563
      %v627 = vpop.f32.mrf.mxu0
      %v628 = vadd.f32 %v405, %v627
      %629 = vmatmul.f32.gmra.mxu0 %v566
      %v630 = vpop.f32.mrf.mxu0
      %v631 = vadd.f32 %v405, %v630
      %632 = vmatmul.f32.gmra.mxu0 %v569
      %v633 = vpop.f32.mrf.mxu0
      %v634 = vadd.f32 %v405, %v633
      %635 = vmatmul.f32.gmra.mxu0 %v572
      %v636 = vpop.f32.mrf.mxu0
      %v637 = vadd.f32 %v405, %v636
      %638 = vmatmul.f32.gmra.mxu0 %v575
      %v639 = vpop.f32.mrf.mxu0
      %v640 = vadd.f32 %v405, %v639
      %641 = vmatmul.f32.gmra.mxu0 %v578
      %v642 = vpop.f32.mrf.mxu0
      %v643 = vadd.f32 %v405, %v642
      %644 = vmatmul.f32.gmra.mxu0 %v581
      %v645 = vpop.f32.mrf.mxu0
      %v646 = vadd.f32 %v405, %v645
      %647 = vmatmul.f32.gmra.mxu0 %v584
      %v648 = vpop.f32.mrf.mxu0
      %v649 = vadd.f32 %v405, %v648
      %650 = vmatmul.f32.gmra.mxu0 %v587
      %v651 = vpop.f32.mrf.mxu0
      %v652 = vadd.f32 %v405, %v651
      %653 = vdwg.mxu0
      %v654 = vmax.f32 %v607, 0.0
      %v655 = vmax.f32 %v610, 0.0
      %v656 = vmax.f32 %v613, 0.0
      %v657 = vmax.f32 %v616, 0.0
      %v658 = vmax.f32 %v619, 0.0
      %v659 = vmax.f32 %v622, 0.0
      %v660 = vmax.f32 %v625, 0.0
      %v661 = vmax.f32 %v628, 0.0
      %v662 = vmax.f32 %v631, 0.0
      %v663 = vmax.f32 %v634, 0.0
      %v664 = vmax.f32 %v637, 0.0
      %v665 = vmax.f32 %v640, 0.0
      %v666 = vmax.f32 %v643, 0.0
      %v667 = vmax.f32 %v646, 0.0
      %v668 = vmax.f32 %v649, 0.0
      %v669 = vmax.f32 %v652, 0.0
      %v670 = vmax.f32 %v525, %v654
      %v671 = vmax.f32 %v526, %v655
      %v672 = vmax.f32 %v527, %v656
      %v673 = vmax.f32 %v528, %v657
      %v674 = vmax.f32 %v529, %v658
      %v675 = vmax.f32 %v530, %v659
      %v676 = vmax.f32 %v531, %v660
      %v677 = vmax.f32 %v532, %v661
      %v678 = vmax.f32 %v533, %v662
      %v679 = vmax.f32 %v534, %v663
      %v680 = vmax.f32 %v535, %v664
      %v681 = vmax.f32 %v536, %v665
      %v682 = vmax.f32 %v537, %v666
      %v683 = vmax.f32 %v538, %v667
      %v684 = vmax.f32 %v539, %v668
      %v685 = vmax.f32 %v540, %v669
      %686 = vst.msk [vmem:[#allocation2 + $0x2] sm:$0xff] %vm331, %v670
      %687 = vst.msk [vmem:[#allocation2 + $0xa] sm:$0xff] %vm331, %v671
      %688 = vst.msk [vmem:[#allocation2 + $0x12] sm:$0xff] %vm331, %v672
      %689 = vst.msk [vmem:[#allocation2 + $0x1a] sm:$0xff] %vm331, %v673
      %690 = vst.msk [vmem:[#allocation2 + $0x22] sm:$0xff] %vm331, %v674
      %691 = vst.msk [vmem:[#allocation2 + $0x2a] sm:$0xff] %vm331, %v675
      %692 = vst.msk [vmem:[#allocation2 + $0x32] sm:$0xff] %vm331, %v676
      %693 = vst.msk [vmem:[#allocation2 + $0x3a] sm:$0xff] %vm331, %v677
      %694 = vst.msk [vmem:[#allocation2 + $0x42] sm:$0xff] %vm331, %v678
      %695 = vst.msk [vmem:[#allocation2 + $0x4a] sm:$0xff] %vm331, %v679
      %696 = vst.msk [vmem:[#allocation2 + $0x52] sm:$0xff] %vm331, %v680
      %697 = vst.msk [vmem:[#allocation2 + $0x5a] sm:$0xff] %vm331, %v681
      %698 = vst.msk [vmem:[#allocation2 + $0x62] sm:$0xff] %vm331, %v682
      %699 = vst.msk [vmem:[#allocation2 + $0x6a] sm:$0xff] %vm331, %v683
      %700 = vst.msk [vmem:[#allocation2 + $0x72] sm:$0xff] %vm331, %v684
      %vm701 = vcmask 129024
      %702 = vst.msk [vmem:[#allocation2 + $0x7a] sm:$0x7f] %vm701, %v685
      %v703 = vld [vmem:[%s3] sm:$0xff]
      %v704 = vld [vmem:[%s3 + $0x8] sm:$0xff]
      %v705 = vld [vmem:[#allocation2] ss:$4 sm:$0xff]
      %s706 = scalar_lea.vmem [#allocation2], 32
      %v707 = vld [vmem:[%s706] ss:$4 sm:$0xff]
      %s708 = scalar_lea.vmem [#allocation2], 64
      %v709 = vld [vmem:[%s708] ss:$4 sm:$0xff]
      %s710 = scalar_lea.vmem [#allocation2], 96
      %v711 = vld [vmem:[%s710] ss:$4 sm:$0xff]
      %s712 = scalar_lea.vmem [#allocation2], 2
      %v713 = vld [vmem:[%s712] ss:$4 sm:$0xff]
      %s714 = scalar_lea.vmem [#allocation2], 34
      %v715 = vld [vmem:[%s714] ss:$4 sm:$0xff]
      %s716 = scalar_lea.vmem [#allocation2], 66
      %v717 = vld [vmem:[%s716] ss:$4 sm:$0xff]
      %s718 = scalar_lea.vmem [#allocation2], 98
      %v719 = vld [vmem:[%s718] ss:$4 sm:$0xff]
      %s720 = scalar_lea.vmem %s3, 16
      %v721 = vld [vmem:[%s720] sm:$0xff]
      %v722 = vld [vmem:[%s720 + $0x8] sm:$0xff]
      %s723 = scalar_lea.vmem [#allocation2], 1
      %v724 = vld [vmem:[%s723] ss:$4 sm:$0xff]
      %s725 = scalar_lea.vmem [#allocation2], 33
      %v726 = vld [vmem:[%s725] ss:$4 sm:$0xff]
      %s727 = scalar_lea.vmem [#allocation2], 65
      %v728 = vld [vmem:[%s727] ss:$4 sm:$0xff]
      %s729 = scalar_lea.vmem [#allocation2], 97
      %v730 = vld [vmem:[%s729] ss:$4 sm:$0xff]
      %v732 = vsel %vm331, %v724, 0
      %v735 = vsel %vm331, %v726, 0
      %v738 = vsel %vm331, %v728, 0
      %v741 = vsel %vm331, %v730, 0
      %743 = vmatpush.msra.mxu0 0.0
      %744 = vmatpush.msra.mxu0 0.0
      %745 = vmatpush.msra.mxu0 0.0
      %746 = vmatpush.msra.mxu0 0.0
      %747 = vmatpush.msra.mxu0 0.0
      %748 = vmatpush.msra.mxu0 0.0
      %749 = vmatpush.msra.mxu0 0.0
      %750 = vmatpush.msra.mxu0 0.0
      %751 = vmatpush.msra.mxu0 0.0
      %752 = vmatpush.msra.mxu0 0.0
      %753 = vmatpush.msra.mxu0 0.0
      %754 = vmatpush.msra.mxu0 0.0
      %755 = vmatpush.msra.mxu0 0.0
      %756 = vmatpush.msra.mxu0 0.0
      %757 = vmatpush.msra.mxu0 %v722
      %758 = vmatpush.msra.mxu0 %v721
      %759 = vmatmul.f32.gmra.mxu0 %v732
      %v760 = vpop.f32.mrf.mxu0
      %v761 = vadd.f32 0.0, %v760
      %762 = vmatmul.f32.gmra.mxu0 %v735
      %v763 = vpop.f32.mrf.mxu0
      %v764 = vadd.f32 0.0, %v763
      %765 = vmatmul.f32.gmra.mxu0 %v738
      %v766 = vpop.f32.mrf.mxu0
      %v767 = vadd.f32 0.0, %v766
      %768 = vmatmul.f32.gmra.mxu0 %v741
      %v769 = vpop.f32.mrf.mxu0
      %v770 = vadd.f32 0.0, %v769
      %771 = vdwg.mxu0
      %v773 = vsel %vm331, %v705, 0
      %v776 = vsel %vm331, %v707, 0
      %v779 = vsel %vm331, %v709, 0
      %v782 = vsel %vm331, %v711, 0
      %784 = vmatpush.msra.mxu0 0.0
      %785 = vmatpush.msra.mxu0 0.0
      %786 = vmatpush.msra.mxu0 0.0
      %787 = vmatpush.msra.mxu0 0.0
      %788 = vmatpush.msra.mxu0 0.0
      %789 = vmatpush.msra.mxu0 0.0
      %790 = vmatpush.msra.mxu0 0.0
      %791 = vmatpush.msra.mxu0 0.0
      %792 = vmatpush.msra.mxu0 0.0
      %793 = vmatpush.msra.mxu0 0.0
      %794 = vmatpush.msra.mxu0 0.0
      %795 = vmatpush.msra.mxu0 0.0
      %796 = vmatpush.msra.mxu0 0.0
      %797 = vmatpush.msra.mxu0 0.0
      %798 = vmatpush.msra.mxu0 %v704
      %799 = vmatpush.msra.mxu0 %v703
      %800 = vmatmul.f32.gmra.mxu0 %v773
      %v801 = vpop.f32.mrf.mxu0
      %v802 = vadd.f32 %v761, %v801
      %803 = vmatmul.f32.gmra.mxu0 %v776
      %v804 = vpop.f32.mrf.mxu0
      %v805 = vadd.f32 %v764, %v804
      %806 = vmatmul.f32.gmra.mxu0 %v779
      %v807 = vpop.f32.mrf.mxu0
      %v808 = vadd.f32 %v767, %v807
      %809 = vmatmul.f32.gmra.mxu0 %v782
      %v810 = vpop.f32.mrf.mxu0
      %v811 = vadd.f32 %v770, %v810
      %812 = vdwg.mxu0
      %s813 = scalar_lea.vmem [#allocation2], 3
      %v814 = vld [vmem:[%s813] ss:$4 sm:$0xff]
      %s815 = scalar_lea.vmem [#allocation2], 35
      %v816 = vld [vmem:[%s815] ss:$4 sm:$0xff]
      %s817 = scalar_lea.vmem [#allocation2], 67
      %v818 = vld [vmem:[%s817] ss:$4 sm:$0xff]
      %s819 = scalar_lea.vmem [#allocation2], 99
      %v820 = vld [vmem:[%s819] ss:$4 sm:$0xff]
      %v822 = vsel %vm331, %v814, 0
      %v825 = vsel %vm331, %v816, 0
      %v828 = vsel %vm331, %v818, 0
      %v831 = vsel %vm331, %v820, 0
      %833 = vmatpush.msra.mxu0 0.0
      %834 = vmatpush.msra.mxu0 0.0
      %835 = vmatpush.msra.mxu0 0.0
      %836 = vmatpush.msra.mxu0 0.0
      %837 = vmatpush.msra.mxu0 0.0
      %838 = vmatpush.msra.mxu0 0.0
      %839 = vmatpush.msra.mxu0 0.0
      %840 = vmatpush.msra.mxu0 0.0
      %841 = vmatpush.msra.mxu0 0.0
      %842 = vmatpush.msra.mxu0 0.0
      %843 = vmatpush.msra.mxu0 0.0
      %844 = vmatpush.msra.mxu0 0.0
      %845 = vmatpush.msra.mxu0 0.0
      %846 = vmatpush.msra.mxu0 0.0
      %847 = vmatpush.msra.mxu0 %v722
      %848 = vmatpush.msra.mxu0 %v721
      %849 = vmatmul.f32.gmra.mxu0 %v822
      %v850 = vpop.f32.mrf.mxu0
      %v851 = vadd.f32 0.0, %v850
      %852 = vmatmul.f32.gmra.mxu0 %v825
      %v853 = vpop.f32.mrf.mxu0
      %v854 = vadd.f32 0.0, %v853
      %855 = vmatmul.f32.gmra.mxu0 %v828
      %v856 = vpop.f32.mrf.mxu0
      %v857 = vadd.f32 0.0, %v856
      %858 = vmatmul.f32.gmra.mxu0 %v831
      %v859 = vpop.f32.mrf.mxu0
      %v860 = vadd.f32 0.0, %v859
      %861 = vdwg.mxu0
      %v863 = vsel %vm331, %v713, 0
      %v866 = vsel %vm331, %v715, 0
      %v869 = vsel %vm331, %v717, 0
      %v872 = vsel %vm331, %v719, 0
      %874 = vmatpush.msra.mxu0 0.0
      %875 = vmatpush.msra.mxu0 0.0
      %876 = vmatpush.msra.mxu0 0.0
      %877 = vmatpush.msra.mxu0 0.0
      %878 = vmatpush.msra.mxu0 0.0
      %879 = vmatpush.msra.mxu0 0.0
      %880 = vmatpush.msra.mxu0 0.0
      %881 = vmatpush.msra.mxu0 0.0
      %882 = vmatpush.msra.mxu0 0.0
      %883 = vmatpush.msra.mxu0 0.0
      %884 = vmatpush.msra.mxu0 0.0
      %885 = vmatpush.msra.mxu0 0.0
      %886 = vmatpush.msra.mxu0 0.0
      %887 = vmatpush.msra.mxu0 0.0
      %888 = vmatpush.msra.mxu0 %v704
      %889 = vmatpush.msra.mxu0 %v703
      %890 = vmatmul.f32.gmra.mxu0 %v863
      %v891 = vpop.f32.mrf.mxu0
      %v892 = vadd.f32 %v851, %v891
      %893 = vmatmul.f32.gmra.mxu0 %v866
      %v894 = vpop.f32.mrf.mxu0
      %v895 = vadd.f32 %v854, %v894
      %896 = vmatmul.f32.gmra.mxu0 %v869
      %v897 = vpop.f32.mrf.mxu0
      %v898 = vadd.f32 %v857, %v897
      %899 = vmatmul.f32.gmra.mxu0 %v872
      %v900 = vpop.f32.mrf.mxu0
      %v901 = vadd.f32 %v860, %v900
      %902 = vdwg.mxu0
      %s903 = scalar_lea.vmem %s3, 32
      %v904 = vld [vmem:[%s903] sm:$0xff]
      %v905 = vld [vmem:[%s903 + $0x8] sm:$0xff]
      %906 = vmatpush.msra.mxu0 0.0
      %907 = vmatpush.msra.mxu0 0.0
      %908 = vmatpush.msra.mxu0 0.0
      %909 = vmatpush.msra.mxu0 0.0
      %910 = vmatpush.msra.mxu0 0.0
      %911 = vmatpush.msra.mxu0 0.0
      %912 = vmatpush.msra.mxu0 0.0
      %913 = vmatpush.msra.mxu0 0.0
      %914 = vmatpush.msra.mxu0 0.0
      %915 = vmatpush.msra.mxu0 0.0
      %916 = vmatpush.msra.mxu0 0.0
      %917 = vmatpush.msra.mxu0 0.0
      %918 = vmatpush.msra.mxu0 0.0
      %919 = vmatpush.msra.mxu0 0.0
      %920 = vmatpush.msra.mxu0 %v905
      %921 = vmatpush.msra.mxu0 %v904
      %922 = vmatmul.f32.gmra.mxu0 %v863
      %v923 = vpop.f32.mrf.mxu0
      %v924 = vadd.f32 0.0, %v923
      %925 = vmatmul.f32.gmra.mxu0 %v866
      %v926 = vpop.f32.mrf.mxu0
      %v927 = vadd.f32 0.0, %v926
      %928 = vmatmul.f32.gmra.mxu0 %v869
      %v929 = vpop.f32.mrf.mxu0
      %v930 = vadd.f32 0.0, %v929
      %931 = vmatmul.f32.gmra.mxu0 %v872
      %v932 = vpop.f32.mrf.mxu0
      %v933 = vadd.f32 0.0, %v932
      %934 = vdwg.mxu0
      %v935 = vadd.f32 %v802, %v924
      %v936 = vadd.f32 %v805, %v927
      %v937 = vadd.f32 %v808, %v930
      %v938 = vadd.f32 %v811, %v933
      %s939 = scalar_lea.vmem [#allocation2], 4
      %v940 = vld [vmem:[%s939] ss:$4 sm:$0xff]
      %s941 = scalar_lea.vmem [#allocation2], 36
      %v942 = vld [vmem:[%s941] ss:$4 sm:$0xff]
      %s943 = scalar_lea.vmem [#allocation2], 68
      %v944 = vld [vmem:[%s943] ss:$4 sm:$0xff]
      %s945 = scalar_lea.vmem [#allocation2], 100
      %v946 = vld [vmem:[%s945] ss:$4 sm:$0xff]
      %v948 = vsel %vm331, %v940, 0
      %v951 = vsel %vm331, %v942, 0
      %v954 = vsel %vm331, %v944, 0
      %v957 = vsel %vm331, %v946, 0
      %959 = vmatpush.msra.mxu0 0.0
      %960 = vmatpush.msra.mxu0 0.0
      %961 = vmatpush.msra.mxu0 0.0
      %962 = vmatpush.msra.mxu0 0.0
      %963 = vmatpush.msra.mxu0 0.0
      %964 = vmatpush.msra.mxu0 0.0
      %965 = vmatpush.msra.mxu0 0.0
      %966 = vmatpush.msra.mxu0 0.0
      %967 = vmatpush.msra.mxu0 0.0
      %968 = vmatpush.msra.mxu0 0.0
      %969 = vmatpush.msra.mxu0 0.0
      %970 = vmatpush.msra.mxu0 0.0
      %971 = vmatpush.msra.mxu0 0.0
      %972 = vmatpush.msra.mxu0 0.0
      %973 = vmatpush.msra.mxu0 %v905
      %974 = vmatpush.msra.mxu0 %v904
      %975 = vmatmul.f32.gmra.mxu0 %v948
      %v976 = vpop.f32.mrf.mxu0
      %v977 = vadd.f32 0.0, %v976
      %978 = vmatmul.f32.gmra.mxu0 %v951
      %v979 = vpop.f32.mrf.mxu0
      %v980 = vadd.f32 0.0, %v979
      %981 = vmatmul.f32.gmra.mxu0 %v954
      %v982 = vpop.f32.mrf.mxu0
      %v983 = vadd.f32 0.0, %v982
      %984 = vmatmul.f32.gmra.mxu0 %v957
      %v985 = vpop.f32.mrf.mxu0
      %v986 = vadd.f32 0.0, %v985
      %987 = vdwg.mxu0
      %v988 = vadd.f32 %v892, %v977
      %v989 = vadd.f32 %v895, %v980
      %v990 = vadd.f32 %v898, %v983
      %v991 = vadd.f32 %v901, %v986
      %s992 = scalar_lea.vmem %s3, 48
      %v993 = vld [vmem:[%s992] sm:$0xff]
      %v994 = vld [vmem:[%s992 + $0x8] sm:$0xff]
      %995 = vmatpush.msra.mxu0 0.0
      %996 = vmatpush.msra.mxu0 0.0
      %997 = vmatpush.msra.mxu0 0.0
      %998 = vmatpush.msra.mxu0 0.0
      %999 = vmatpush.msra.mxu0 0.0
      %1000 = vmatpush.msra.mxu0 0.0
      %1001 = vmatpush.msra.mxu0 0.0
      %1002 = vmatpush.msra.mxu0 0.0
      %1003 = vmatpush.msra.mxu0 0.0
      %1004 = vmatpush.msra.mxu0 0.0
      %1005 = vmatpush.msra.mxu0 0.0
      %1006 = vmatpush.msra.mxu0 0.0
      %1007 = vmatpush.msra.mxu0 0.0
      %1008 = vmatpush.msra.mxu0 0.0
      %1009 = vmatpush.msra.mxu0 %v994
      %1010 = vmatpush.msra.mxu0 %v993
      %1011 = vmatmul.f32.gmra.mxu0 %v822
      %v1012 = vpop.f32.mrf.mxu0
      %v1013 = vadd.f32 0.0, %v1012
      %1014 = vmatmul.f32.gmra.mxu0 %v825
      %v1015 = vpop.f32.mrf.mxu0
      %v1016 = vadd.f32 0.0, %v1015
      %1017 = vmatmul.f32.gmra.mxu0 %v828
      %v1018 = vpop.f32.mrf.mxu0
      %v1019 = vadd.f32 0.0, %v1018
      %1020 = vmatmul.f32.gmra.mxu0 %v831
      %v1021 = vpop.f32.mrf.mxu0
      %v1022 = vadd.f32 0.0, %v1021
      %1023 = vdwg.mxu0
      %v1024 = vadd.f32 %v935, %v1013
      %v1025 = vadd.f32 %v936, %v1016
      %v1026 = vadd.f32 %v937, %v1019
      %v1027 = vadd.f32 %v938, %v1022
      %s1028 = scalar_lea.vmem [#allocation2], 5
      %v1029 = vld [vmem:[%s1028] ss:$4 sm:$0xff]
      %s1030 = scalar_lea.vmem [#allocation2], 37
      %v1031 = vld [vmem:[%s1030] ss:$4 sm:$0xff]
      %s1032 = scalar_lea.vmem [#allocation2], 69
      %v1033 = vld [vmem:[%s1032] ss:$4 sm:$0xff]
      %s1034 = scalar_lea.vmem [#allocation2], 101
      %v1035 = vld [vmem:[%s1034] ss:$4 sm:$0xff]
      %v1037 = vsel %vm331, %v1029, 0
      %v1040 = vsel %vm331, %v1031, 0
      %v1043 = vsel %vm331, %v1033, 0
      %v1046 = vsel %vm331, %v1035, 0
      %1048 = vmatpush.msra.mxu0 0.0
      %1049 = vmatpush.msra.mxu0 0.0
      %1050 = vmatpush.msra.mxu0 0.0
      %1051 = vmatpush.msra.mxu0 0.0
      %1052 = vmatpush.msra.mxu0 0.0
      %1053 = vmatpush.msra.mxu0 0.0
      %1054 = vmatpush.msra.mxu0 0.0
      %1055 = vmatpush.msra.mxu0 0.0
      %1056 = vmatpush.msra.mxu0 0.0
      %1057 = vmatpush.msra.mxu0 0.0
      %1058 = vmatpush.msra.mxu0 0.0
      %1059 = vmatpush.msra.mxu0 0.0
      %1060 = vmatpush.msra.mxu0 0.0
      %1061 = vmatpush.msra.mxu0 0.0
      %1062 = vmatpush.msra.mxu0 %v994
      %1063 = vmatpush.msra.mxu0 %v993
      %1064 = vmatmul.f32.gmra.mxu0 %v1037
      %v1065 = vpop.f32.mrf.mxu0
      %v1066 = vadd.f32 0.0, %v1065
      %1067 = vmatmul.f32.gmra.mxu0 %v1040
      %v1068 = vpop.f32.mrf.mxu0
      %v1069 = vadd.f32 0.0, %v1068
      %1070 = vmatmul.f32.gmra.mxu0 %v1043
      %v1071 = vpop.f32.mrf.mxu0
      %v1072 = vadd.f32 0.0, %v1071
      %1073 = vmatmul.f32.gmra.mxu0 %v1046
      %v1074 = vpop.f32.mrf.mxu0
      %v1075 = vadd.f32 0.0, %v1074
      %1076 = vdwg.mxu0
      %v1077 = vadd.f32 %v988, %v1066
      %v1078 = vadd.f32 %v989, %v1069
      %v1079 = vadd.f32 %v990, %v1072
      %v1080 = vadd.f32 %v991, %v1075
      %s1081 = scalar_lea.vmem %s3, 64
      %v1082 = vld [vmem:[%s1081] sm:$0xff]
      %v1083 = vld [vmem:[%s1081 + $0x8] sm:$0xff]
      %1084 = vmatpush.msra.mxu0 0.0
      %1085 = vmatpush.msra.mxu0 0.0
      %1086 = vmatpush.msra.mxu0 0.0
      %1087 = vmatpush.msra.mxu0 0.0
      %1088 = vmatpush.msra.mxu0 0.0
      %1089 = vmatpush.msra.mxu0 0.0
      %1090 = vmatpush.msra.mxu0 0.0
      %1091 = vmatpush.msra.mxu0 0.0
      %1092 = vmatpush.msra.mxu0 0.0
      %1093 = vmatpush.msra.mxu0 0.0
      %1094 = vmatpush.msra.mxu0 0.0
      %1095 = vmatpush.msra.mxu0 0.0
      %1096 = vmatpush.msra.mxu0 0.0
      %1097 = vmatpush.msra.mxu0 0.0
      %1098 = vmatpush.msra.mxu0 %v1083
      %1099 = vmatpush.msra.mxu0 %v1082
      %1100 = vmatmul.f32.gmra.mxu0 %v948
      %v1101 = vpop.f32.mrf.mxu0
      %v1102 = vadd.f32 0.0, %v1101
      %1103 = vmatmul.f32.gmra.mxu0 %v951
      %v1104 = vpop.f32.mrf.mxu0
      %v1105 = vadd.f32 0.0, %v1104
      %1106 = vmatmul.f32.gmra.mxu0 %v954
      %v1107 = vpop.f32.mrf.mxu0
      %v1108 = vadd.f32 0.0, %v1107
      %1109 = vmatmul.f32.gmra.mxu0 %v957
      %v1110 = vpop.f32.mrf.mxu0
      %v1111 = vadd.f32 0.0, %v1110
      %1112 = vdwg.mxu0
      %v1113 = vadd.f32 %v1024, %v1102
      %v1114 = vadd.f32 %v1025, %v1105
      %v1115 = vadd.f32 %v1026, %v1108
      %v1116 = vadd.f32 %v1027, %v1111
      %s1117 = scalar_lea.vmem [#allocation2], 6
      %v1118 = vld [vmem:[%s1117] ss:$4 sm:$0xff]
      %s1119 = scalar_lea.vmem [#allocation2], 38
      %v1120 = vld [vmem:[%s1119] ss:$4 sm:$0xff]
      %s1121 = scalar_lea.vmem [#allocation2], 70
      %v1122 = vld [vmem:[%s1121] ss:$4 sm:$0xff]
      %s1123 = scalar_lea.vmem [#allocation2], 102
      %v1124 = vld [vmem:[%s1123] ss:$4 sm:$0xff]
      %v1126 = vsel %vm331, %v1118, 0
      %v1129 = vsel %vm331, %v1120, 0
      %v1132 = vsel %vm331, %v1122, 0
      %v1135 = vsel %vm331, %v1124, 0
      %1137 = vmatpush.msra.mxu0 0.0
      %1138 = vmatpush.msra.mxu0 0.0
      %1139 = vmatpush.msra.mxu0 0.0
      %1140 = vmatpush.msra.mxu0 0.0
      %1141 = vmatpush.msra.mxu0 0.0
      %1142 = vmatpush.msra.mxu0 0.0
      %1143 = vmatpush.msra.mxu0 0.0
      %1144 = vmatpush.msra.mxu0 0.0
      %1145 = vmatpush.msra.mxu0 0.0
      %1146 = vmatpush.msra.mxu0 0.0
      %1147 = vmatpush.msra.mxu0 0.0
      %1148 = vmatpush.msra.mxu0 0.0
      %1149 = vmatpush.msra.mxu0 0.0
      %1150 = vmatpush.msra.mxu0 0.0
      %1151 = vmatpush.msra.mxu0 %v1083
      %1152 = vmatpush.msra.mxu0 %v1082
      %1153 = vmatmul.f32.gmra.mxu0 %v1126
      %v1154 = vpop.f32.mrf.mxu0
      %v1155 = vadd.f32 0.0, %v1154
      %1156 = vmatmul.f32.gmra.mxu0 %v1129
      %v1157 = vpop.f32.mrf.mxu0
      %v1158 = vadd.f32 0.0, %v1157
      %1159 = vmatmul.f32.gmra.mxu0 %v1132
      %v1160 = vpop.f32.mrf.mxu0
      %v1161 = vadd.f32 0.0, %v1160
      %1162 = vmatmul.f32.gmra.mxu0 %v1135
      %v1163 = vpop.f32.mrf.mxu0
      %v1164 = vadd.f32 0.0, %v1163
      %1165 = vdwg.mxu0
      %v1166 = vadd.f32 %v1077, %v1155
      %v1167 = vadd.f32 %v1078, %v1158
      %v1168 = vadd.f32 %v1079, %v1161
      %v1169 = vadd.f32 %v1080, %v1164
      %v1171 = vperm.slane %v337, 0
      %v1173 = vadd.f32 %v1113, %v1171
      %v1174 = vadd.f32 %v1114, %v1171
      %v1175 = vadd.f32 %v1115, %v1171
      %v1176 = vadd.f32 %v1116, %v1171
      %v1177 = vmax.f32 %v1173, 0.0
      %v1178 = vmax.f32 %v1174, 0.0
      %v1179 = vmax.f32 %v1175, 0.0
      %v1180 = vmax.f32 %v1176, 0.0
      %v1181 = vadd.f32 %v1166, %v1171
      %v1182 = vadd.f32 %v1167, %v1171
      %v1183 = vadd.f32 %v1168, %v1171
      %v1184 = vadd.f32 %v1169, %v1171
      %v1185 = vmax.f32 %v1181, 0.0
      %v1186 = vmax.f32 %v1182, 0.0
      %v1187 = vmax.f32 %v1183, 0.0
      %v1188 = vmax.f32 %v1184, 0.0
      %v1189 = vmax.f32 %v1177, %v1185
      %v1190 = vmax.f32 %v1178, %v1186
      %v1191 = vmax.f32 %v1179, %v1187
      %v1192 = vmax.f32 %v1180, %v1188
      %v1193 = vld [vmem:[%s5] sm:$0xff]
      %v1194 = vld [vmem:[%s5 + $0x8] sm:$0xff]
      %s1195 = scalar_lea.vmem %s5, 16
      %v1196 = vld [vmem:[%s1195] sm:$0xff]
      %v1197 = vld [vmem:[%s1195 + $0x8] sm:$0xff]
      %v1199 = vrot.slane %v1189, 1
      %v1200 = vsel %vm331, %v1199, 0
      %1202 = vmatpush.msra.mxu0 0.0
      %1203 = vmatpush.msra.mxu0 0.0
      %1204 = vmatpush.msra.mxu0 0.0
      %1205 = vmatpush.msra.mxu0 0.0
      %1206 = vmatpush.msra.mxu0 0.0
      %1207 = vmatpush.msra.mxu0 0.0
      %1208 = vmatpush.msra.mxu0 0.0
      %1209 = vmatpush.msra.mxu0 0.0
      %1210 = vmatpush.msra.mxu0 0.0
      %1211 = vmatpush.msra.mxu0 0.0
      %1212 = vmatpush.msra.mxu0 0.0
      %1213 = vmatpush.msra.mxu0 0.0
      %1214 = vmatpush.msra.mxu0 0.0
      %1215 = vmatpush.msra.mxu0 0.0
      %1216 = vmatpush.msra.mxu0 %v1197
      %1217 = vmatpush.msra.mxu0 %v1196
      %1218 = vmatmul.f32.gmra.mxu0 %v1200
      %v1219 = vpop.f32.mrf.mxu0
      %v1220 = vadd.f32 0.0, %v1219
      %1221 = vdwg.mxu0
      %v1222 = vsel %vm331, %v1189, 0
      %1224 = vmatpush.msra.mxu0 0.0
      %1225 = vmatpush.msra.mxu0 0.0
      %1226 = vmatpush.msra.mxu0 0.0
      %1227 = vmatpush.msra.mxu0 0.0
      %1228 = vmatpush.msra.mxu0 0.0
      %1229 = vmatpush.msra.mxu0 0.0
      %1230 = vmatpush.msra.mxu0 0.0
      %1231 = vmatpush.msra.mxu0 0.0
      %1232 = vmatpush.msra.mxu0 0.0
      %1233 = vmatpush.msra.mxu0 0.0
      %1234 = vmatpush.msra.mxu0 0.0
      %1235 = vmatpush.msra.mxu0 0.0
      %1236 = vmatpush.msra.mxu0 0.0
      %1237 = vmatpush.msra.mxu0 0.0
      %1238 = vmatpush.msra.mxu0 %v1194
      %1239 = vmatpush.msra.mxu0 %v1193
      %1240 = vmatmul.f32.gmra.mxu0 %v1222
      %v1241 = vpop.f32.mrf.mxu0
      %v1242 = vadd.f32 %v1220, %v1241
      %1243 = vdwg.mxu0
      %s1244 = scalar_lea.vmem %s5, 32
      %v1245 = vld [vmem:[%s1244] sm:$0xff]
      %v1246 = vld [vmem:[%s1244 + $0x8] sm:$0xff]
      %v1247 = vrot.slane %v1189, 2
      %v1248 = vsel %vm331, %v1247, 0
      %1250 = vmatpush.msra.mxu0 0.0
      %1251 = vmatpush.msra.mxu0 0.0
      %1252 = vmatpush.msra.mxu0 0.0
      %1253 = vmatpush.msra.mxu0 0.0
      %1254 = vmatpush.msra.mxu0 0.0
      %1255 = vmatpush.msra.mxu0 0.0
      %1256 = vmatpush.msra.mxu0 0.0
      %1257 = vmatpush.msra.mxu0 0.0
      %1258 = vmatpush.msra.mxu0 0.0
      %1259 = vmatpush.msra.mxu0 0.0
      %1260 = vmatpush.msra.mxu0 0.0
      %1261 = vmatpush.msra.mxu0 0.0
      %1262 = vmatpush.msra.mxu0 0.0
      %1263 = vmatpush.msra.mxu0 0.0
      %1264 = vmatpush.msra.mxu0 %v1246
      %1265 = vmatpush.msra.mxu0 %v1245
      %1266 = vmatmul.f32.gmra.mxu0 %v1248
      %v1267 = vpop.f32.mrf.mxu0
      %v1268 = vadd.f32 0.0, %v1267
      %1269 = vdwg.mxu0
      %v1270 = vadd.f32 %v1242, %v1268
      %s1271 = scalar_lea.vmem %s5, 48
      %v1272 = vld [vmem:[%s1271] sm:$0xff]
      %v1273 = vld [vmem:[%s1271 + $0x8] sm:$0xff]
      %v1274 = vrot.slane %v1189, 3
      %v1275 = vsel %vm331, %v1274, 0
      %1277 = vmatpush.msra.mxu0 0.0
      %1278 = vmatpush.msra.mxu0 0.0
      %1279 = vmatpush.msra.mxu0 0.0
      %1280 = vmatpush.msra.mxu0 0.0
      %1281 = vmatpush.msra.mxu0 0.0
      %1282 = vmatpush.msra.mxu0 0.0
      %1283 = vmatpush.msra.mxu0 0.0
      %1284 = vmatpush.msra.mxu0 0.0
      %1285 = vmatpush.msra.mxu0 0.0
      %1286 = vmatpush.msra.mxu0 0.0
      %1287 = vmatpush.msra.mxu0 0.0
      %1288 = vmatpush.msra.mxu0 0.0
      %1289 = vmatpush.msra.mxu0 0.0
      %1290 = vmatpush.msra.mxu0 0.0
      %1291 = vmatpush.msra.mxu0 %v1273
      %1292 = vmatpush.msra.mxu0 %v1272
      %1293 = vmatmul.f32.gmra.mxu0 %v1275
      %v1294 = vpop.f32.mrf.mxu0
      %v1295 = vadd.f32 0.0, %v1294
      %1296 = vdwg.mxu0
      %v1297 = vadd.f32 %v1270, %v1295
      %s1298 = scalar_lea.vmem %s5, 64
      %v1299 = vld [vmem:[%s1298] sm:$0xff]
      %v1300 = vld [vmem:[%s1298 + $0x8] sm:$0xff]
      %v1301 = vrot.slane %v1189, 4
      %v1302 = vsel %vm331, %v1301, 0
      %1304 = vmatpush.msra.mxu0 0.0
      %1305 = vmatpush.msra.mxu0 0.0
      %1306 = vmatpush.msra.mxu0 0.0
      %1307 = vmatpush.msra.mxu0 0.0
      %1308 = vmatpush.msra.mxu0 0.0
      %1309 = vmatpush.msra.mxu0 0.0
      %1310 = vmatpush.msra.mxu0 0.0
      %1311 = vmatpush.msra.mxu0 0.0
      %1312 = vmatpush.msra.mxu0 0.0
      %1313 = vmatpush.msra.mxu0 0.0
      %1314 = vmatpush.msra.mxu0 0.0
      %1315 = vmatpush.msra.mxu0 0.0
      %1316 = vmatpush.msra.mxu0 0.0
      %1317 = vmatpush.msra.mxu0 0.0
      %1318 = vmatpush.msra.mxu0 %v1300
      %1319 = vmatpush.msra.mxu0 %v1299
      %1320 = vmatmul.f32.gmra.mxu0 %v1302
      %v1321 = vpop.f32.mrf.mxu0
      %v1322 = vadd.f32 0.0, %v1321
      %1323 = vdwg.mxu0
      %v1324 = vadd.f32 %v1297, %v1322
      %s1325 = scalar_lea.vmem %s5, 80
      %v1326 = vld [vmem:[%s1325] sm:$0xff]
      %v1327 = vld [vmem:[%s1325 + $0x8] sm:$0xff]
      %v1328 = vrot.slane %v1189, 5
      %v1329 = vsel %vm331, %v1328, 0
      %1331 = vmatpush.msra.mxu0 0.0
      %1332 = vmatpush.msra.mxu0 0.0
      %1333 = vmatpush.msra.mxu0 0.0
      %1334 = vmatpush.msra.mxu0 0.0
      %1335 = vmatpush.msra.mxu0 0.0
      %1336 = vmatpush.msra.mxu0 0.0
      %1337 = vmatpush.msra.mxu0 0.0
      %1338 = vmatpush.msra.mxu0 0.0
      %1339 = vmatpush.msra.mxu0 0.0
      %1340 = vmatpush.msra.mxu0 0.0
      %1341 = vmatpush.msra.mxu0 0.0
      %1342 = vmatpush.msra.mxu0 0.0
      %1343 = vmatpush.msra.mxu0 0.0
      %1344 = vmatpush.msra.mxu0 0.0
      %1345 = vmatpush.msra.mxu0 %v1327
      %1346 = vmatpush.msra.mxu0 %v1326
      %1347 = vmatmul.f32.gmra.mxu0 %v1329
      %v1348 = vpop.f32.mrf.mxu0
      %v1349 = vadd.f32 0.0, %v1348
      %1350 = vdwg.mxu0
      %v1351 = vadd.f32 %v1324, %v1349
      %s1352 = scalar_lea.vmem %s5, 96
      %v1353 = vld [vmem:[%s1352] sm:$0xff]
      %v1354 = vld [vmem:[%s1352 + $0x8] sm:$0xff]
      %v1355 = vrot.slane %v1189, 6
      %v1356 = vsel %vm331, %v1355, 0
      %1358 = vmatpush.msra.mxu0 0.0
      %1359 = vmatpush.msra.mxu0 0.0
      %1360 = vmatpush.msra.mxu0 0.0
      %1361 = vmatpush.msra.mxu0 0.0
      %1362 = vmatpush.msra.mxu0 0.0
      %1363 = vmatpush.msra.mxu0 0.0
      %1364 = vmatpush.msra.mxu0 0.0
      %1365 = vmatpush.msra.mxu0 0.0
      %1366 = vmatpush.msra.mxu0 0.0
      %1367 = vmatpush.msra.mxu0 0.0
      %1368 = vmatpush.msra.mxu0 0.0
      %1369 = vmatpush.msra.mxu0 0.0
      %1370 = vmatpush.msra.mxu0 0.0
      %1371 = vmatpush.msra.mxu0 0.0
      %1372 = vmatpush.msra.mxu0 %v1354
      %1373 = vmatpush.msra.mxu0 %v1353
      %1374 = vmatmul.f32.gmra.mxu0 %v1356
      %v1375 = vpop.f32.mrf.mxu0
      %v1376 = vadd.f32 0.0, %v1375
      %1377 = vdwg.mxu0
      %v1378 = vadd.f32 %v1351, %v1376
      %s1379 = scalar_lea.vmem %s5, 112
      %v1380 = vld [vmem:[%s1379] sm:$0xff]
      %v1381 = vld [vmem:[%s1379 + $0x8] sm:$0xff]
      %v1382 = vrot.slane %v1189, 7
      %v1383 = vsel %vm331, %v1382, 0
      %1385 = vmatpush.msra.mxu0 0.0
      %1386 = vmatpush.msra.mxu0 0.0
      %1387 = vmatpush.msra.mxu0 0.0
      %1388 = vmatpush.msra.mxu0 0.0
      %1389 = vmatpush.msra.mxu0 0.0
      %1390 = vmatpush.msra.mxu0 0.0
      %1391 = vmatpush.msra.mxu0 0.0
      %1392 = vmatpush.msra.mxu0 0.0
      %1393 = vmatpush.msra.mxu0 0.0
      %1394 = vmatpush.msra.mxu0 0.0
      %1395 = vmatpush.msra.mxu0 0.0
      %1396 = vmatpush.msra.mxu0 0.0
      %1397 = vmatpush.msra.mxu0 0.0
      %1398 = vmatpush.msra.mxu0 0.0
      %1399 = vmatpush.msra.mxu0 %v1381
      %1400 = vmatpush.msra.mxu0 %v1380
      %1401 = vmatmul.f32.gmra.mxu0 %v1383
      %v1402 = vpop.f32.mrf.mxu0
      %v1403 = vadd.f32 0.0, %v1402
      %1404 = vdwg.mxu0
      %v1405 = vadd.f32 %v1378, %v1403
      %s1406 = scalar_lea.vmem %s5, 128
      %v1407 = vld [vmem:[%s1406] sm:$0xff]
      %v1408 = vld [vmem:[%s1406 + $0x8] sm:$0xff]
      %v1410 = vsel %vm331, %v1190, 0
      %1412 = vmatpush.msra.mxu0 0.0
      %1413 = vmatpush.msra.mxu0 0.0
      %1414 = vmatpush.msra.mxu0 0.0
      %1415 = vmatpush.msra.mxu0 0.0
      %1416 = vmatpush.msra.mxu0 0.0
      %1417 = vmatpush.msra.mxu0 0.0
      %1418 = vmatpush.msra.mxu0 0.0
      %1419 = vmatpush.msra.mxu0 0.0
      %1420 = vmatpush.msra.mxu0 0.0
      %1421 = vmatpush.msra.mxu0 0.0
      %1422 = vmatpush.msra.mxu0 0.0
      %1423 = vmatpush.msra.mxu0 0.0
      %1424 = vmatpush.msra.mxu0 0.0
      %1425 = vmatpush.msra.mxu0 0.0
      %1426 = vmatpush.msra.mxu0 %v1408
      %1427 = vmatpush.msra.mxu0 %v1407
      %1428 = vmatmul.f32.gmra.mxu0 %v1410
      %v1429 = vpop.f32.mrf.mxu0
      %v1430 = vadd.f32 0.0, %v1429
      %1431 = vdwg.mxu0
      %v1432 = vadd.f32 %v1405, %v1430
      %s1433 = scalar_lea.vmem %s5, 144
      %v1434 = vld [vmem:[%s1433] sm:$0xff]
      %v1435 = vld [vmem:[%s1433 + $0x8] sm:$0xff]
      %v1436 = vrot.slane %v1190, 1
      %v1437 = vsel %vm331, %v1436, 0
      %1439 = vmatpush.msra.mxu0 0.0
      %1440 = vmatpush.msra.mxu0 0.0
      %1441 = vmatpush.msra.mxu0 0.0
      %1442 = vmatpush.msra.mxu0 0.0
      %1443 = vmatpush.msra.mxu0 0.0
      %1444 = vmatpush.msra.mxu0 0.0
      %1445 = vmatpush.msra.mxu0 0.0
      %1446 = vmatpush.msra.mxu0 0.0
      %1447 = vmatpush.msra.mxu0 0.0
      %1448 = vmatpush.msra.mxu0 0.0
      %1449 = vmatpush.msra.mxu0 0.0
      %1450 = vmatpush.msra.mxu0 0.0
      %1451 = vmatpush.msra.mxu0 0.0
      %1452 = vmatpush.msra.mxu0 0.0
      %1453 = vmatpush.msra.mxu0 %v1435
      %1454 = vmatpush.msra.mxu0 %v1434
      %1455 = vmatmul.f32.gmra.mxu0 %v1437
      %v1456 = vpop.f32.mrf.mxu0
      %v1457 = vadd.f32 0.0, %v1456
      %1458 = vdwg.mxu0
      %v1459 = vadd.f32 %v1432, %v1457
      %s1460 = scalar_lea.vmem %s5, 160
      %v1461 = vld [vmem:[%s1460] sm:$0xff]
      %v1462 = vld [vmem:[%s1460 + $0x8] sm:$0xff]
      %v1463 = vrot.slane %v1190, 2
      %v1464 = vsel %vm331, %v1463, 0
      %1466 = vmatpush.msra.mxu0 0.0
      %1467 = vmatpush.msra.mxu0 0.0
      %1468 = vmatpush.msra.mxu0 0.0
      %1469 = vmatpush.msra.mxu0 0.0
      %1470 = vmatpush.msra.mxu0 0.0
      %1471 = vmatpush.msra.mxu0 0.0
      %1472 = vmatpush.msra.mxu0 0.0
      %1473 = vmatpush.msra.mxu0 0.0
      %1474 = vmatpush.msra.mxu0 0.0
      %1475 = vmatpush.msra.mxu0 0.0
      %1476 = vmatpush.msra.mxu0 0.0
      %1477 = vmatpush.msra.mxu0 0.0
      %1478 = vmatpush.msra.mxu0 0.0
      %1479 = vmatpush.msra.mxu0 0.0
      %1480 = vmatpush.msra.mxu0 %v1462
      %1481 = vmatpush.msra.mxu0 %v1461
      %1482 = vmatmul.f32.gmra.mxu0 %v1464
      %v1483 = vpop.f32.mrf.mxu0
      %v1484 = vadd.f32 0.0, %v1483
      %1485 = vdwg.mxu0
      %v1486 = vadd.f32 %v1459, %v1484
      %s1487 = scalar_lea.vmem %s5, 176
      %v1488 = vld [vmem:[%s1487] sm:$0xff]
      %v1489 = vld [vmem:[%s1487 + $0x8] sm:$0xff]
      %v1490 = vrot.slane %v1190, 3
      %v1491 = vsel %vm331, %v1490, 0
      %1493 = vmatpush.msra.mxu0 0.0
      %1494 = vmatpush.msra.mxu0 0.0
      %1495 = vmatpush.msra.mxu0 0.0
      %1496 = vmatpush.msra.mxu0 0.0
      %1497 = vmatpush.msra.mxu0 0.0
      %1498 = vmatpush.msra.mxu0 0.0
      %1499 = vmatpush.msra.mxu0 0.0
      %1500 = vmatpush.msra.mxu0 0.0
      %1501 = vmatpush.msra.mxu0 0.0
      %1502 = vmatpush.msra.mxu0 0.0
      %1503 = vmatpush.msra.mxu0 0.0
      %1504 = vmatpush.msra.mxu0 0.0
      %1505 = vmatpush.msra.mxu0 0.0
      %1506 = vmatpush.msra.mxu0 0.0
      %1507 = vmatpush.msra.mxu0 %v1489
      %1508 = vmatpush.msra.mxu0 %v1488
      %1509 = vmatmul.f32.gmra.mxu0 %v1491
      %v1510 = vpop.f32.mrf.mxu0
      %v1511 = vadd.f32 0.0, %v1510
      %1512 = vdwg.mxu0
      %v1513 = vadd.f32 %v1486, %v1511
      %s1514 = scalar_lea.vmem %s5, 192
      %v1515 = vld [vmem:[%s1514] sm:$0xff]
      %v1516 = vld [vmem:[%s1514 + $0x8] sm:$0xff]
      %v1517 = vrot.slane %v1190, 4
      %v1518 = vsel %vm331, %v1517, 0
      %1520 = vmatpush.msra.mxu0 0.0
      %1521 = vmatpush.msra.mxu0 0.0
      %1522 = vmatpush.msra.mxu0 0.0
      %1523 = vmatpush.msra.mxu0 0.0
      %1524 = vmatpush.msra.mxu0 0.0
      %1525 = vmatpush.msra.mxu0 0.0
      %1526 = vmatpush.msra.mxu0 0.0
      %1527 = vmatpush.msra.mxu0 0.0
      %1528 = vmatpush.msra.mxu0 0.0
      %1529 = vmatpush.msra.mxu0 0.0
      %1530 = vmatpush.msra.mxu0 0.0
      %1531 = vmatpush.msra.mxu0 0.0
      %1532 = vmatpush.msra.mxu0 0.0
      %1533 = vmatpush.msra.mxu0 0.0
      %1534 = vmatpush.msra.mxu0 %v1516
      %1535 = vmatpush.msra.mxu0 %v1515
      %1536 = vmatmul.f32.gmra.mxu0 %v1518
      %v1537 = vpop.f32.mrf.mxu0
      %v1538 = vadd.f32 0.0, %v1537
      %1539 = vdwg.mxu0
      %v1540 = vadd.f32 %v1513, %v1538
      %s1541 = scalar_lea.vmem %s5, 208
      %v1542 = vld [vmem:[%s1541] sm:$0xff]
      %v1543 = vld [vmem:[%s1541 + $0x8] sm:$0xff]
      %v1544 = vrot.slane %v1190, 5
      %v1545 = vsel %vm331, %v1544, 0
      %1547 = vmatpush.msra.mxu0 0.0
      %1548 = vmatpush.msra.mxu0 0.0
      %1549 = vmatpush.msra.mxu0 0.0
      %1550 = vmatpush.msra.mxu0 0.0
      %1551 = vmatpush.msra.mxu0 0.0
      %1552 = vmatpush.msra.mxu0 0.0
      %1553 = vmatpush.msra.mxu0 0.0
      %1554 = vmatpush.msra.mxu0 0.0
      %1555 = vmatpush.msra.mxu0 0.0
      %1556 = vmatpush.msra.mxu0 0.0
      %1557 = vmatpush.msra.mxu0 0.0
      %1558 = vmatpush.msra.mxu0 0.0
      %1559 = vmatpush.msra.mxu0 0.0
      %1560 = vmatpush.msra.mxu0 0.0
      %1561 = vmatpush.msra.mxu0 %v1543
      %1562 = vmatpush.msra.mxu0 %v1542
      %1563 = vmatmul.f32.gmra.mxu0 %v1545
      %v1564 = vpop.f32.mrf.mxu0
      %v1565 = vadd.f32 0.0, %v1564
      %1566 = vdwg.mxu0
      %v1567 = vadd.f32 %v1540, %v1565
      %s1568 = scalar_lea.vmem %s5, 224
      %v1569 = vld [vmem:[%s1568] sm:$0xff]
      %v1570 = vld [vmem:[%s1568 + $0x8] sm:$0xff]
      %v1571 = vrot.slane %v1190, 6
      %v1572 = vsel %vm331, %v1571, 0
      %1574 = vmatpush.msra.mxu0 0.0
      %1575 = vmatpush.msra.mxu0 0.0
      %1576 = vmatpush.msra.mxu0 0.0
      %1577 = vmatpush.msra.mxu0 0.0
      %1578 = vmatpush.msra.mxu0 0.0
      %1579 = vmatpush.msra.mxu0 0.0
      %1580 = vmatpush.msra.mxu0 0.0
      %1581 = vmatpush.msra.mxu0 0.0
      %1582 = vmatpush.msra.mxu0 0.0
      %1583 = vmatpush.msra.mxu0 0.0
      %1584 = vmatpush.msra.mxu0 0.0
      %1585 = vmatpush.msra.mxu0 0.0
      %1586 = vmatpush.msra.mxu0 0.0
      %1587 = vmatpush.msra.mxu0 0.0
      %1588 = vmatpush.msra.mxu0 %v1570
      %1589 = vmatpush.msra.mxu0 %v1569
      %1590 = vmatmul.f32.gmra.mxu0 %v1572
      %v1591 = vpop.f32.mrf.mxu0
      %v1592 = vadd.f32 0.0, %v1591
      %1593 = vdwg.mxu0
      %v1594 = vadd.f32 %v1567, %v1592
      %s1595 = scalar_lea.vmem %s5, 240
      %v1596 = vld [vmem:[%s1595] sm:$0xff]
      %v1597 = vld [vmem:[%s1595 + $0x8] sm:$0xff]
      %v1598 = vrot.slane %v1190, 7
      %v1599 = vsel %vm331, %v1598, 0
      %1601 = vmatpush.msra.mxu0 0.0
      %1602 = vmatpush.msra.mxu0 0.0
      %1603 = vmatpush.msra.mxu0 0.0
      %1604 = vmatpush.msra.mxu0 0.0
      %1605 = vmatpush.msra.mxu0 0.0
      %1606 = vmatpush.msra.mxu0 0.0
      %1607 = vmatpush.msra.mxu0 0.0
      %1608 = vmatpush.msra.mxu0 0.0
      %1609 = vmatpush.msra.mxu0 0.0
      %1610 = vmatpush.msra.mxu0 0.0
      %1611 = vmatpush.msra.mxu0 0.0
      %1612 = vmatpush.msra.mxu0 0.0
      %1613 = vmatpush.msra.mxu0 0.0
      %1614 = vmatpush.msra.mxu0 0.0
      %1615 = vmatpush.msra.mxu0 %v1597
      %1616 = vmatpush.msra.mxu0 %v1596
      %1617 = vmatmul.f32.gmra.mxu0 %v1599
      %v1618 = vpop.f32.mrf.mxu0
      %v1619 = vadd.f32 0.0, %v1618
      %1620 = vdwg.mxu0
      %v1621 = vadd.f32 %v1594, %v1619
      %s1622 = scalar_lea.vmem %s5, 256
      %v1623 = vld [vmem:[%s1622] sm:$0xff]
      %v1624 = vld [vmem:[%s1622 + $0x8] sm:$0xff]
      %v1626 = vsel %vm331, %v1191, 0
      %1628 = vmatpush.msra.mxu0 0.0
      %1629 = vmatpush.msra.mxu0 0.0
      %1630 = vmatpush.msra.mxu0 0.0
      %1631 = vmatpush.msra.mxu0 0.0
      %1632 = vmatpush.msra.mxu0 0.0
      %1633 = vmatpush.msra.mxu0 0.0
      %1634 = vmatpush.msra.mxu0 0.0
      %1635 = vmatpush.msra.mxu0 0.0
      %1636 = vmatpush.msra.mxu0 0.0
      %1637 = vmatpush.msra.mxu0 0.0
      %1638 = vmatpush.msra.mxu0 0.0
      %1639 = vmatpush.msra.mxu0 0.0
      %1640 = vmatpush.msra.mxu0 0.0
      %1641 = vmatpush.msra.mxu0 0.0
      %1642 = vmatpush.msra.mxu0 %v1624
      %1643 = vmatpush.msra.mxu0 %v1623
      %1644 = vmatmul.f32.gmra.mxu0 %v1626
      %v1645 = vpop.f32.mrf.mxu0
      %v1646 = vadd.f32 0.0, %v1645
      %1647 = vdwg.mxu0
      %v1648 = vadd.f32 %v1621, %v1646
      %s1649 = scalar_lea.vmem %s5, 272
      %v1650 = vld [vmem:[%s1649] sm:$0xff]
      %v1651 = vld [vmem:[%s1649 + $0x8] sm:$0xff]
      %v1652 = vrot.slane %v1191, 1
      %v1653 = vsel %vm331, %v1652, 0
      %1655 = vmatpush.msra.mxu0 0.0
      %1656 = vmatpush.msra.mxu0 0.0
      %1657 = vmatpush.msra.mxu0 0.0
      %1658 = vmatpush.msra.mxu0 0.0
      %1659 = vmatpush.msra.mxu0 0.0
      %1660 = vmatpush.msra.mxu0 0.0
      %1661 = vmatpush.msra.mxu0 0.0
      %1662 = vmatpush.msra.mxu0 0.0
      %1663 = vmatpush.msra.mxu0 0.0
      %1664 = vmatpush.msra.mxu0 0.0
      %1665 = vmatpush.msra.mxu0 0.0
      %1666 = vmatpush.msra.mxu0 0.0
      %1667 = vmatpush.msra.mxu0 0.0
      %1668 = vmatpush.msra.mxu0 0.0
      %1669 = vmatpush.msra.mxu0 %v1651
      %1670 = vmatpush.msra.mxu0 %v1650
      %1671 = vmatmul.f32.gmra.mxu0 %v1653
      %v1672 = vpop.f32.mrf.mxu0
      %v1673 = vadd.f32 0.0, %v1672
      %1674 = vdwg.mxu0
      %v1675 = vadd.f32 %v1648, %v1673
      %s1676 = scalar_lea.vmem %s5, 288
      %v1677 = vld [vmem:[%s1676] sm:$0xff]
      %v1678 = vld [vmem:[%s1676 + $0x8] sm:$0xff]
      %v1679 = vrot.slane %v1191, 2
      %v1680 = vsel %vm331, %v1679, 0
      %1682 = vmatpush.msra.mxu0 0.0
      %1683 = vmatpush.msra.mxu0 0.0
      %1684 = vmatpush.msra.mxu0 0.0
      %1685 = vmatpush.msra.mxu0 0.0
      %1686 = vmatpush.msra.mxu0 0.0
      %1687 = vmatpush.msra.mxu0 0.0
      %1688 = vmatpush.msra.mxu0 0.0
      %1689 = vmatpush.msra.mxu0 0.0
      %1690 = vmatpush.msra.mxu0 0.0
      %1691 = vmatpush.msra.mxu0 0.0
      %1692 = vmatpush.msra.mxu0 0.0
      %1693 = vmatpush.msra.mxu0 0.0
      %1694 = vmatpush.msra.mxu0 0.0
      %1695 = vmatpush.msra.mxu0 0.0
      %1696 = vmatpush.msra.mxu0 %v1678
      %1697 = vmatpush.msra.mxu0 %v1677
      %1698 = vmatmul.f32.gmra.mxu0 %v1680
      %v1699 = vpop.f32.mrf.mxu0
      %v1700 = vadd.f32 0.0, %v1699
      %1701 = vdwg.mxu0
      %v1702 = vadd.f32 %v1675, %v1700
      %s1703 = scalar_lea.vmem %s5, 304
      %v1704 = vld [vmem:[%s1703] sm:$0xff]
      %v1705 = vld [vmem:[%s1703 + $0x8] sm:$0xff]
      %v1706 = vrot.slane %v1191, 3
      %v1707 = vsel %vm331, %v1706, 0
      %1709 = vmatpush.msra.mxu0 0.0
      %1710 = vmatpush.msra.mxu0 0.0
      %1711 = vmatpush.msra.mxu0 0.0
      %1712 = vmatpush.msra.mxu0 0.0
      %1713 = vmatpush.msra.mxu0 0.0
      %1714 = vmatpush.msra.mxu0 0.0
      %1715 = vmatpush.msra.mxu0 0.0
      %1716 = vmatpush.msra.mxu0 0.0
      %1717 = vmatpush.msra.mxu0 0.0
      %1718 = vmatpush.msra.mxu0 0.0
      %1719 = vmatpush.msra.mxu0 0.0
      %1720 = vmatpush.msra.mxu0 0.0
      %1721 = vmatpush.msra.mxu0 0.0
      %1722 = vmatpush.msra.mxu0 0.0
      %1723 = vmatpush.msra.mxu0 %v1705
      %1724 = vmatpush.msra.mxu0 %v1704
      %1725 = vmatmul.f32.gmra.mxu0 %v1707
      %v1726 = vpop.f32.mrf.mxu0
      %v1727 = vadd.f32 0.0, %v1726
      %1728 = vdwg.mxu0
      %v1729 = vadd.f32 %v1702, %v1727
      %s1730 = scalar_lea.vmem %s5, 320
      %v1731 = vld [vmem:[%s1730] sm:$0xff]
      %v1732 = vld [vmem:[%s1730 + $0x8] sm:$0xff]
      %v1733 = vrot.slane %v1191, 4
      %v1734 = vsel %vm331, %v1733, 0
      %1736 = vmatpush.msra.mxu0 0.0
      %1737 = vmatpush.msra.mxu0 0.0
      %1738 = vmatpush.msra.mxu0 0.0
      %1739 = vmatpush.msra.mxu0 0.0
      %1740 = vmatpush.msra.mxu0 0.0
      %1741 = vmatpush.msra.mxu0 0.0
      %1742 = vmatpush.msra.mxu0 0.0
      %1743 = vmatpush.msra.mxu0 0.0
      %1744 = vmatpush.msra.mxu0 0.0
      %1745 = vmatpush.msra.mxu0 0.0
      %1746 = vmatpush.msra.mxu0 0.0
      %1747 = vmatpush.msra.mxu0 0.0
      %1748 = vmatpush.msra.mxu0 0.0
      %1749 = vmatpush.msra.mxu0 0.0
      %1750 = vmatpush.msra.mxu0 %v1732
      %1751 = vmatpush.msra.mxu0 %v1731
      %1752 = vmatmul.f32.gmra.mxu0 %v1734
      %v1753 = vpop.f32.mrf.mxu0
      %v1754 = vadd.f32 0.0, %v1753
      %1755 = vdwg.mxu0
      %v1756 = vadd.f32 %v1729, %v1754
      %s1757 = scalar_lea.vmem %s5, 336
      %v1758 = vld [vmem:[%s1757] sm:$0xff]
      %v1759 = vld [vmem:[%s1757 + $0x8] sm:$0xff]
      %v1760 = vrot.slane %v1191, 5
      %v1761 = vsel %vm331, %v1760, 0
      %1763 = vmatpush.msra.mxu0 0.0
      %1764 = vmatpush.msra.mxu0 0.0
      %1765 = vmatpush.msra.mxu0 0.0
      %1766 = vmatpush.msra.mxu0 0.0
      %1767 = vmatpush.msra.mxu0 0.0
      %1768 = vmatpush.msra.mxu0 0.0
      %1769 = vmatpush.msra.mxu0 0.0
      %1770 = vmatpush.msra.mxu0 0.0
      %1771 = vmatpush.msra.mxu0 0.0
      %1772 = vmatpush.msra.mxu0 0.0
      %1773 = vmatpush.msra.mxu0 0.0
      %1774 = vmatpush.msra.mxu0 0.0
      %1775 = vmatpush.msra.mxu0 0.0
      %1776 = vmatpush.msra.mxu0 0.0
      %1777 = vmatpush.msra.mxu0 %v1759
      %1778 = vmatpush.msra.mxu0 %v1758
      %1779 = vmatmul.f32.gmra.mxu0 %v1761
      %v1780 = vpop.f32.mrf.mxu0
      %v1781 = vadd.f32 0.0, %v1780
      %1782 = vdwg.mxu0
      %v1783 = vadd.f32 %v1756, %v1781
      %s1784 = scalar_lea.vmem %s5, 352
      %v1785 = vld [vmem:[%s1784] sm:$0xff]
      %v1786 = vld [vmem:[%s1784 + $0x8] sm:$0xff]
      %v1787 = vrot.slane %v1191, 6
      %v1788 = vsel %vm331, %v1787, 0
      %1790 = vmatpush.msra.mxu0 0.0
      %1791 = vmatpush.msra.mxu0 0.0
      %1792 = vmatpush.msra.mxu0 0.0
      %1793 = vmatpush.msra.mxu0 0.0
      %1794 = vmatpush.msra.mxu0 0.0
      %1795 = vmatpush.msra.mxu0 0.0
      %1796 = vmatpush.msra.mxu0 0.0
      %1797 = vmatpush.msra.mxu0 0.0
      %1798 = vmatpush.msra.mxu0 0.0
      %1799 = vmatpush.msra.mxu0 0.0
      %1800 = vmatpush.msra.mxu0 0.0
      %1801 = vmatpush.msra.mxu0 0.0
      %1802 = vmatpush.msra.mxu0 0.0
      %1803 = vmatpush.msra.mxu0 0.0
      %1804 = vmatpush.msra.mxu0 %v1786
      %1805 = vmatpush.msra.mxu0 %v1785
      %1806 = vmatmul.f32.gmra.mxu0 %v1788
      %v1807 = vpop.f32.mrf.mxu0
      %v1808 = vadd.f32 0.0, %v1807
      %1809 = vdwg.mxu0
      %v1810 = vadd.f32 %v1783, %v1808
      %s1811 = scalar_lea.vmem %s5, 368
      %v1812 = vld [vmem:[%s1811] sm:$0xff]
      %v1813 = vld [vmem:[%s1811 + $0x8] sm:$0xff]
      %v1814 = vrot.slane %v1191, 7
      %v1815 = vsel %vm331, %v1814, 0
      %1817 = vmatpush.msra.mxu0 0.0
      %1818 = vmatpush.msra.mxu0 0.0
      %1819 = vmatpush.msra.mxu0 0.0
      %1820 = vmatpush.msra.mxu0 0.0
      %1821 = vmatpush.msra.mxu0 0.0
      %1822 = vmatpush.msra.mxu0 0.0
      %1823 = vmatpush.msra.mxu0 0.0
      %1824 = vmatpush.msra.mxu0 0.0
      %1825 = vmatpush.msra.mxu0 0.0
      %1826 = vmatpush.msra.mxu0 0.0
      %1827 = vmatpush.msra.mxu0 0.0
      %1828 = vmatpush.msra.mxu0 0.0
      %1829 = vmatpush.msra.mxu0 0.0
      %1830 = vmatpush.msra.mxu0 0.0
      %1831 = vmatpush.msra.mxu0 %v1813
      %1832 = vmatpush.msra.mxu0 %v1812
      %1833 = vmatmul.f32.gmra.mxu0 %v1815
      %v1834 = vpop.f32.mrf.mxu0
      %v1835 = vadd.f32 0.0, %v1834
      %1836 = vdwg.mxu0
      %v1837 = vadd.f32 %v1810, %v1835
      %s1838 = scalar_lea.vmem %s5, 384
      %v1839 = vld [vmem:[%s1838] sm:$0xff]
      %v1840 = vld [vmem:[%s1838 + $0x8] sm:$0xff]
      %v1842 = vsel %vm331, %v1192, 0
      %1844 = vmatpush.msra.mxu0 0.0
      %1845 = vmatpush.msra.mxu0 0.0
      %1846 = vmatpush.msra.mxu0 0.0
      %1847 = vmatpush.msra.mxu0 0.0
      %1848 = vmatpush.msra.mxu0 0.0
      %1849 = vmatpush.msra.mxu0 0.0
      %1850 = vmatpush.msra.mxu0 0.0
      %1851 = vmatpush.msra.mxu0 0.0
      %1852 = vmatpush.msra.mxu0 0.0
      %1853 = vmatpush.msra.mxu0 0.0
      %1854 = vmatpush.msra.mxu0 0.0
      %1855 = vmatpush.msra.mxu0 0.0
      %1856 = vmatpush.msra.mxu0 0.0
      %1857 = vmatpush.msra.mxu0 0.0
      %1858 = vmatpush.msra.mxu0 %v1840
      %1859 = vmatpush.msra.mxu0 %v1839
      %1860 = vmatmul.f32.gmra.mxu0 %v1842
      %v1861 = vpop.f32.mrf.mxu0
      %v1862 = vadd.f32 0.0, %v1861
      %1863 = vdwg.mxu0
      %v1864 = vadd.f32 %v1837, %v1862
      %s1865 = scalar_lea.vmem %s5, 400
      %v1866 = vld [vmem:[%s1865] sm:$0xff]
      %v1867 = vld [vmem:[%s1865 + $0x8] sm:$0xff]
      %v1868 = vrot.slane %v1192, 1
      %v1869 = vsel %vm331, %v1868, 0
      %1871 = vmatpush.msra.mxu0 0.0
      %1872 = vmatpush.msra.mxu0 0.0
      %1873 = vmatpush.msra.mxu0 0.0
      %1874 = vmatpush.msra.mxu0 0.0
      %1875 = vmatpush.msra.mxu0 0.0
      %1876 = vmatpush.msra.mxu0 0.0
      %1877 = vmatpush.msra.mxu0 0.0
      %1878 = vmatpush.msra.mxu0 0.0
      %1879 = vmatpush.msra.mxu0 0.0
      %1880 = vmatpush.msra.mxu0 0.0
      %1881 = vmatpush.msra.mxu0 0.0
      %1882 = vmatpush.msra.mxu0 0.0
      %1883 = vmatpush.msra.mxu0 0.0
      %1884 = vmatpush.msra.mxu0 0.0
      %1885 = vmatpush.msra.mxu0 %v1867
      %1886 = vmatpush.msra.mxu0 %v1866
      %1887 = vmatmul.f32.gmra.mxu0 %v1869
      %v1888 = vpop.f32.mrf.mxu0
      %v1889 = vadd.f32 0.0, %v1888
      %1890 = vdwg.mxu0
      %v1891 = vadd.f32 %v1864, %v1889
      %s1892 = scalar_lea.vmem %s5, 416
      %v1893 = vld [vmem:[%s1892] sm:$0xff]
      %v1894 = vld [vmem:[%s1892 + $0x8] sm:$0xff]
      %v1895 = vrot.slane %v1192, 2
      %v1896 = vsel %vm331, %v1895, 0
      %1898 = vmatpush.msra.mxu0 0.0
      %1899 = vmatpush.msra.mxu0 0.0
      %1900 = vmatpush.msra.mxu0 0.0
      %1901 = vmatpush.msra.mxu0 0.0
      %1902 = vmatpush.msra.mxu0 0.0
      %1903 = vmatpush.msra.mxu0 0.0
      %1904 = vmatpush.msra.mxu0 0.0
      %1905 = vmatpush.msra.mxu0 0.0
      %1906 = vmatpush.msra.mxu0 0.0
      %1907 = vmatpush.msra.mxu0 0.0
      %1908 = vmatpush.msra.mxu0 0.0
      %1909 = vmatpush.msra.mxu0 0.0
      %1910 = vmatpush.msra.mxu0 0.0
      %1911 = vmatpush.msra.mxu0 0.0
      %1912 = vmatpush.msra.mxu0 %v1894
      %1913 = vmatpush.msra.mxu0 %v1893
      %1914 = vmatmul.f32.gmra.mxu0 %v1896
      %v1915 = vpop.f32.mrf.mxu0
      %v1916 = vadd.f32 0.0, %v1915
      %1917 = vdwg.mxu0
      %v1918 = vadd.f32 %v1891, %v1916
      %s1919 = scalar_lea.vmem %s5, 432
      %v1920 = vld [vmem:[%s1919] sm:$0xff]
      %v1921 = vld [vmem:[%s1919 + $0x8] sm:$0xff]
      %v1922 = vrot.slane %v1192, 3
      %v1923 = vsel %vm331, %v1922, 0
      %1925 = vmatpush.msra.mxu0 0.0
      %1926 = vmatpush.msra.mxu0 0.0
      %1927 = vmatpush.msra.mxu0 0.0
      %1928 = vmatpush.msra.mxu0 0.0
      %1929 = vmatpush.msra.mxu0 0.0
      %1930 = vmatpush.msra.mxu0 0.0
      %1931 = vmatpush.msra.mxu0 0.0
      %1932 = vmatpush.msra.mxu0 0.0
      %1933 = vmatpush.msra.mxu0 0.0
      %1934 = vmatpush.msra.mxu0 0.0
      %1935 = vmatpush.msra.mxu0 0.0
      %1936 = vmatpush.msra.mxu0 0.0
      %1937 = vmatpush.msra.mxu0 0.0
      %1938 = vmatpush.msra.mxu0 0.0
      %1939 = vmatpush.msra.mxu0 %v1921
      %1940 = vmatpush.msra.mxu0 %v1920
      %1941 = vmatmul.f32.gmra.mxu0 %v1923
      %v1942 = vpop.f32.mrf.mxu0
      %v1943 = vadd.f32 0.0, %v1942
      %1944 = vdwg.mxu0
      %v1945 = vadd.f32 %v1918, %v1943
      %s1946 = scalar_lea.vmem %s5, 448
      %v1947 = vld [vmem:[%s1946] sm:$0xff]
      %v1948 = vld [vmem:[%s1946 + $0x8] sm:$0xff]
      %v1949 = vrot.slane %v1192, 4
      %v1950 = vsel %vm331, %v1949, 0
      %1952 = vmatpush.msra.mxu0 0.0
      %1953 = vmatpush.msra.mxu0 0.0
      %1954 = vmatpush.msra.mxu0 0.0
      %1955 = vmatpush.msra.mxu0 0.0
      %1956 = vmatpush.msra.mxu0 0.0
      %1957 = vmatpush.msra.mxu0 0.0
      %1958 = vmatpush.msra.mxu0 0.0
      %1959 = vmatpush.msra.mxu0 0.0
      %1960 = vmatpush.msra.mxu0 0.0
      %1961 = vmatpush.msra.mxu0 0.0
      %1962 = vmatpush.msra.mxu0 0.0
      %1963 = vmatpush.msra.mxu0 0.0
      %1964 = vmatpush.msra.mxu0 0.0
      %1965 = vmatpush.msra.mxu0 0.0
      %1966 = vmatpush.msra.mxu0 %v1948
      %1967 = vmatpush.msra.mxu0 %v1947
      %1968 = vmatmul.f32.gmra.mxu0 %v1950
      %v1969 = vpop.f32.mrf.mxu0
      %v1970 = vadd.f32 0.0, %v1969
      %1971 = vdwg.mxu0
      %v1972 = vadd.f32 %v1945, %v1970
      %s1973 = scalar_lea.vmem %s5, 464
      %v1974 = vld [vmem:[%s1973] sm:$0xff]
      %v1975 = vld [vmem:[%s1973 + $0x8] sm:$0xff]
      %v1976 = vrot.slane %v1192, 5
      %v1977 = vsel %vm331, %v1976, 0
      %1979 = vmatpush.msra.mxu0 0.0
      %1980 = vmatpush.msra.mxu0 0.0
      %1981 = vmatpush.msra.mxu0 0.0
      %1982 = vmatpush.msra.mxu0 0.0
      %1983 = vmatpush.msra.mxu0 0.0
      %1984 = vmatpush.msra.mxu0 0.0
      %1985 = vmatpush.msra.mxu0 0.0
      %1986 = vmatpush.msra.mxu0 0.0
      %1987 = vmatpush.msra.mxu0 0.0
      %1988 = vmatpush.msra.mxu0 0.0
      %1989 = vmatpush.msra.mxu0 0.0
      %1990 = vmatpush.msra.mxu0 0.0
      %1991 = vmatpush.msra.mxu0 0.0
      %1992 = vmatpush.msra.mxu0 0.0
      %1993 = vmatpush.msra.mxu0 %v1975
      %1994 = vmatpush.msra.mxu0 %v1974
      %1995 = vmatmul.f32.gmra.mxu0 %v1977
      %v1996 = vpop.f32.mrf.mxu0
      %v1997 = vadd.f32 0.0, %v1996
      %1998 = vdwg.mxu0
      %v1999 = vadd.f32 %v1972, %v1997
      %s2000 = scalar_lea.vmem %s5, 480
      %v2001 = vld [vmem:[%s2000] sm:$0xff]
      %v2002 = vld [vmem:[%s2000 + $0x8] sm:$0xff]
      %v2003 = vrot.slane %v1192, 6
      %v2004 = vsel %vm331, %v2003, 0
      %2006 = vmatpush.msra.mxu0 0.0
      %2007 = vmatpush.msra.mxu0 0.0
      %2008 = vmatpush.msra.mxu0 0.0
      %2009 = vmatpush.msra.mxu0 0.0
      %2010 = vmatpush.msra.mxu0 0.0
      %2011 = vmatpush.msra.mxu0 0.0
      %2012 = vmatpush.msra.mxu0 0.0
      %2013 = vmatpush.msra.mxu0 0.0
      %2014 = vmatpush.msra.mxu0 0.0
      %2015 = vmatpush.msra.mxu0 0.0
      %2016 = vmatpush.msra.mxu0 0.0
      %2017 = vmatpush.msra.mxu0 0.0
      %2018 = vmatpush.msra.mxu0 0.0
      %2019 = vmatpush.msra.mxu0 0.0
      %2020 = vmatpush.msra.mxu0 %v2002
      %2021 = vmatpush.msra.mxu0 %v2001
      %2022 = vmatmul.f32.gmra.mxu0 %v2004
      %v2023 = vpop.f32.mrf.mxu0
      %v2024 = vadd.f32 0.0, %v2023
      %2025 = vdwg.mxu0
      %v2026 = vadd.f32 %v1999, %v2024
      %s2027 = scalar_lea.vmem %s5, 496
      %v2028 = vld [vmem:[%s2027] sm:$0xff]
      %v2029 = vld [vmem:[%s2027 + $0x8] sm:$0xff]
      %v2030 = vrot.slane %v1192, 7
      %v2031 = vsel %vm331, %v2030, 0
      %2033 = vmatpush.msra.mxu0 0.0
      %2034 = vmatpush.msra.mxu0 0.0
      %2035 = vmatpush.msra.mxu0 0.0
      %2036 = vmatpush.msra.mxu0 0.0
      %2037 = vmatpush.msra.mxu0 0.0
      %2038 = vmatpush.msra.mxu0 0.0
      %2039 = vmatpush.msra.mxu0 0.0
      %2040 = vmatpush.msra.mxu0 0.0
      %2041 = vmatpush.msra.mxu0 0.0
      %2042 = vmatpush.msra.mxu0 0.0
      %2043 = vmatpush.msra.mxu0 0.0
      %2044 = vmatpush.msra.mxu0 0.0
      %2045 = vmatpush.msra.mxu0 0.0
      %2046 = vmatpush.msra.mxu0 0.0
      %2047 = vmatpush.msra.mxu0 %v2029
      %2048 = vmatpush.msra.mxu0 %v2028
      %2049 = vmatmul.f32.gmra.mxu0 %v2031
      %v2050 = vpop.f32.mrf.mxu0
      %v2051 = vadd.f32 0.0, %v2050
      %2052 = vdwg.mxu0
      %v2053 = vadd.f32 %v2026, %v2051
      %v2054 = vadd.f32 %v2053, %v338
      %v2055 = vmax.f32 %v2054, 0.0
      %v2056 = vmul.f32 %v2055, %v339
      %vm2057 = vcmask 516096
      %v2058 = vsel %vm2057, %v2056, 0.0
      %2059 = vadd.xlane.f32.xlu0 %v2058
      %v2060 = vpop.xlane.xlu0 %2059
      %v2061 = vadd.f32 %v2060, %v340
      %v2062 = vsub.f32 0.0, %v2061
      %v2063 = vmul.f32 %v2062, 1.442695
      %v2064 = vpow.pop %v2063
      %v2065 = vadd.f32 %v2064, 1.0
      %v2066 = vrcp.pop %v2065
      %v2067 = vmul.f32 %v2065, %v2066
      %v2068 = vsub.f32 1.0, %v2067
      %v2069 = vmul.f32 %v2066, %v2068
      %v2070 = vadd.f32 %v2066, %v2069
      %vm2071 = vweird.f32 %v2065
      %vm2072 = vweird.f32 %v2066
      %vm2073 = vmor %vm2071, %vm2072
      %v2074 = vsel %vm2073, %v2066, %v2070
      %v2075 = vand.u32 2147483647, %v2065
      %vm2076 = vcmp.eq.f32.partialorder %v2075, 8.507059e+37
      %v2077 = vand.u32 %v2065, 2147483648
      %v2078 = vor.u32 1.1754944e-38, %v2077
      %v2079 = vsel %vm2076, %v2078, %v2074
      %v2080 = vmul.f32 1.0, %v2079
      %vm2081 = vcmask 0
      %2082 = vst.msk [vmem:[%s330] sm:$0x1] %vm2081, %v2080
      %p2083 = scmp.lt.s32.totalorder %s22, 1
      %s2084 = scalar_select %p2083, %s22, 1
      %s2085 = scalar_lea.vmem %s9, %s2084
      // Predicated region
      $region57: #{forward.1} parent=55 // pred_check
        %p2086 = pneg %p234
      $region58: #{forward.1} parent=55 // pred_check_branch
        %2088 = sbr.rel (%p2086) target = $region60
      $region59: #{forward.1} parent=55 // pred_region
        _
      $region60: #{forward.1} parent=55 // pred_fallthru
        _
    $region56: #{forward.1} parent=5 // pred_fallthru
      _
    %p2089 = scmp.le.s32.totalorder 2, %s17
    // Predicated region
    $region61: #{forward.1} parent=5 // pred_check
      %p2090 = pneg %p2089
    $region62: #{forward.1} parent=5 // pred_check_branch
      %2092 = sbr.rel (%p2090) target = $region64
    $region63: #{forward.1} parent=5 // pred_region
      %s2093 = ssub.s32 %s17, 2
      // Predicated region
      $region65: #{forward.1} parent=63 // pred_check
        %p2094 = pneg %p240
      $region66: #{forward.1} parent=63 // pred_check_branch
        %2096 = sbr.rel (%p2094) target = $region68
      $region67: #{forward.1} parent=63 // pred_region
        %p2097 = scmp.lt.s32.totalorder %s23, 1
        %s2098 = scalar_select %p2097, %s23, 1
        %s2099 = scalar_lea.vmem %s9, %s2098
      $region68: #{forward.1} parent=63 // pred_fallthru
        _
    $region64: #{forward.1} parent=5 // pred_fallthru
      _
  $region6: #{forward.1} parent=0 // loop_footer
    %s21 = sadd.s32 1, %s17
  $region7: #{forward.1} parent=0 // loop_footer_branch
    %16 = sbr.rel target = $region3
  $region8: #{forward.1} parent=0 // loop_exit
    _

</llo_original>
